<compile_context>
chip_gen: v7x
topology: tpu7x:2x2x1
jax: 0.10.0
libtpu: 0.0.40
codegen_flags: <defaults>
</compile_context>

<pallas_src>
import functools

import jax
import jax.numpy as jnp
import numpy as np
from jax.experimental import pallas as pl
from jax.experimental.pallas import tpu as pltpu


def _dot(x, w_ref):
    """x @ W on the MXU, accumulating in f32 (x cast to the weight dtype)."""
    w = w_ref[...]
    return jnp.dot(x.astype(w.dtype), w, preferred_element_type=jnp.float32)


def _mlp2(x, w1_ref, b1_ref, w2_ref, b2_ref):
    # Dropout -> Linear -> ReLU -> Dropout -> Linear -> ReLU (dropout = identity, eval mode)
    h = jnp.maximum(_dot(x, w1_ref) + b1_ref[...], 0.0)
    return jnp.maximum(_dot(h, w2_ref) + b2_ref[...], 0.0)


def _softmax(x, axis):
    m = jnp.max(x, axis=axis, keepdims=True)
    ex = jnp.exp(x - m)
    return ex * pl.reciprocal(jnp.sum(ex, axis=axis, keepdims=True), approx=True)


def decomposable_attention_kernel(
    ab_ref,                               # (Bt, La+Lb, E): [premise ; hypothesis] embeddings
    wf1, bf1, wf2, bf2,                   # attend.f MLP
    wg1x, wg1c, bg1, wg2, bg2,            # compare.g MLP, 1st layer split into (x | attended)
    wh1a, wh1b, bh1, wh2, bh2,            # aggregate.h MLP, 1st layer split into (v_a | v_b)
    wo, bo,                               # aggregate.linear (H -> 3)
    y_ref,                                # (Bt, 3)
    *, la,                                # static: premise length
):
    cdt = wf1.dtype                       # matmul input dtype (f32 or bf16)
    AB = ab_ref[...]                      # (Bt, L2, E)
    bt, l2, _ = AB.shape
    AB2 = AB.reshape(bt * l2, AB.shape[-1])

    # ---- Attend: one fused shared-weight MLP over premise + hypothesis rows ----
    fAB = _mlp2(AB2, wf1, bf1, wf2, bf2)                       # (Bt*L2, H) f32
    fAB3 = fAB.reshape(bt, l2, fAB.shape[-1]).astype(cdt)
    f_A = fAB3[:, :la, :]                                      # (Bt, La, H)
    f_B = fAB3[:, la:, :]                                      # (Bt, Lb, H)

    # e[b,q,k] = <f_A[b,q], f_B[b,k]>  — contraction on last dims, no explicit .T
    e = jnp.einsum("bqh,bkh->bqk", f_A, f_B, preferred_element_type=jnp.float32)

    A3 = AB[:, :la, :]                                         # (Bt, La, E)
    B3 = AB[:, la:, :]                                         # (Bt, Lb, E)
    # TODO(synk): no padding-token masking in softmax / aggregation (the reference
    # PyTorch module also ignores padding).
    p_beta = _softmax(e, axis=-1).astype(cdt)                  # softmax over hypothesis tokens
    p_alpha = _softmax(e, axis=1).astype(cdt)                  # softmax over premise tokens (== softmax(e^T, -1))
    beta = jnp.einsum("bqk,bkd->bqd", p_beta, B3, preferred_element_type=jnp.float32)    # (Bt, La, E)
    alpha = jnp.einsum("bqk,bqd->bkd", p_alpha, A3, preferred_element_type=jnp.float32)  # (Bt, Lb, E)

    # ---- Compare: fused over both branches; concat([x, attended], -1) @ W done as
    #      x @ Wx + attended @ Wc (no lane-axis concatenation). ----
    att2 = jnp.concatenate([beta, alpha], axis=1).reshape(bt * l2, beta.shape[-1])
    h1 = jnp.maximum(_dot(AB2, wg1x) + _dot(att2, wg1c) + bg1[...], 0.0)
    V = jnp.maximum(_dot(h1, wg2) + bg2[...], 0.0)             # (Bt*L2, H)
    V3 = V.reshape(bt, l2, V.shape[-1])
    v_a = jnp.sum(V3[:, :la, :], axis=1)                       # (Bt, H)
    v_b = jnp.sum(V3[:, la:, :], axis=1)                       # (Bt, H)

    # ---- Aggregate: concat([v_a, v_b], -1) @ W as two matmuls, then classifier ----
    h = jnp.maximum(_dot(v_a, wh1a) + _dot(v_b, wh1b) + bh1[...], 0.0)
    h = jnp.maximum(_dot(h, wh2) + bh2[...], 0.0)
    y_ref[...] = (_dot(h, wo) + bo[...]).astype(y_ref.dtype)   # one (Bt, 3) store per step


def decomposable_attention_forward(premises, hypotheses, params, *,
                                    batch_tile=64, compute_dtype=jnp.float32):
    """premises/hypotheses: (batch, seq) int32 token ids."""
    emb = params["embedding"]
    A = jnp.take(emb, premises, axis=0)       # (batch, La, E)  — embedding gather stays in JAX
    Bm = jnp.take(emb, hypotheses, axis=0)    # (batch, Lb, E)
    batch, La, E = A.shape
    Lb = Bm.shape[1]
    H = params["wf1"].shape[1]
    num_out = params["wo"].shape[1]
    L2 = La + Lb

    # Stack premise + hypothesis along the sequence axis so both branches of the
    # shared-weight MLPs run as a single matmul inside the kernel.
    AB = jnp.concatenate([A, Bm], axis=1).astype(compute_dtype)   # (batch, L2, E)

    # Batch tiling: Bt examples per grid step so matmul M = Bt*L2 approaches the
    # MXU tile (choose batch_tile <= batch/2 on v7x so both TensorCores get work).
    if batch > batch_tile:
        assert batch_tile % 8 == 0, "batch_tile must be a multiple of 8"
        Bt = batch_tile
    else:
        Bt = batch
    padded = pl.cdiv(batch, Bt) * Bt
    if padded != batch:
        AB = jnp.pad(AB, ((0, padded - batch), (0, 0), (0, 0)))

    # Compare/aggregate first-layer weights split into two slabs so that
    # concat([x, y], axis=-1) @ W == x @ W[:d] + y @ W[d:].
    def cast(w):
        return w.astype(compute_dtype)

    weights = [
        cast(params["wf1"]), params["bf1"], cast(params["wf2"]), params["bf2"],
        cast(params["wg1"][:E]), cast(params["wg1"][E:]), params["bg1"],
        cast(params["wg2"]), params["bg2"],
        cast(params["wh1"][:H]), cast(params["wh1"][H:]), params["bh1"],
        cast(params["wh2"]), params["bh2"],
        cast(params["wo"]), params["bo"],
    ]

    # Weights/biases: full-array blocks with constant index maps — fetched once and
    # kept resident (the pipeline skips re-DMA when the block index repeats).
    def weight_spec(arr):
        return pl.BlockSpec(arr.shape, lambda b: (0, 0))

    y = pl.pallas_call(
        functools.partial(decomposable_attention_kernel, la=La),
        out_shape=jax.ShapeDtypeStruct((padded, num_out), jnp.float32),
        grid=(padded // Bt,),
        in_specs=[pl.BlockSpec((Bt, L2, E), lambda b: (b, 0, 0))]
                 + [weight_spec(w) for w in weights],
        out_specs=pl.BlockSpec((Bt, num_out), lambda b: (b, 0)),
        compiler_params=pltpu.CompilerParams(
            dimension_semantics=("parallel",)),
    )(AB, *weights)
    return y[:batch]


def reference_forward(premises, hypotheses, p):
    """Pure-JAX reference (mirrors the PyTorch module in eval mode)."""
    A = p["embedding"][premises]
    Bm = p["embedding"][hypotheses]

    def mlp(x, w1, b1, w2, b2):
        h = jnp.maximum(x @ w1 + b1, 0.0)
        return jnp.maximum(h @ w2 + b2, 0.0)

    f_A = mlp(A, p["wf1"], p["bf1"], p["wf2"], p["bf2"])
    f_B = mlp(Bm, p["wf1"], p["bf1"], p["wf2"], p["bf2"])
    e = jnp.einsum("bij,bkj->bik", f_A, f_B)
    beta = jnp.einsum("bik,bkd->bid", jax.nn.softmax(e, axis=-1), Bm)
    alpha = jnp.einsum("bik,bkd->bid", jax.nn.softmax(jnp.swapaxes(e, 1, 2), axis=-1), A)
    V_A = mlp(jnp.concatenate([A, beta], axis=2), p["wg1"], p["bg1"], p["wg2"], p["bg2"])
    V_B = mlp(jnp.concatenate([Bm, alpha], axis=2), p["wg1"], p["bg1"], p["wg2"], p["bg2"])
    v_a = V_A.sum(axis=1)
    v_b = V_B.sum(axis=1)
    h = mlp(jnp.concatenate([v_a, v_b], axis=1), p["wh1"], p["bh1"], p["wh2"], p["bh2"])
    return h @ p["wo"] + p["bo"]


def init_params(key, vocab_size, embed_size, num_hiddens, num_out=3):
    ks = jax.random.split(key, 16)
    E, H = embed_size, num_hiddens
    s = 0.1

    def lin(k, fan_in, fan_out):
        kw, kb = jax.random.split(k)
        w = jax.random.normal(kw, (fan_in, fan_out), jnp.float32) * s
        b = jax.random.normal(kb, (1, fan_out), jnp.float32) * s
        return w, b

    params = {"embedding": jax.random.normal(ks[0], (vocab_size, E), jnp.float32)}
    params["wf1"], params["bf1"] = lin(ks[1], E, H)        # attend.f (num_inputs_attend = E)
    params["wf2"], params["bf2"] = lin(ks[2], H, H)
    params["wg1"], params["bg1"] = lin(ks[3], 2 * E, H)    # compare.g (num_inputs_compare = 2E)
    params["wg2"], params["bg2"] = lin(ks[4], H, H)
    params["wh1"], params["bh1"] = lin(ks[5], 2 * H, H)    # aggregate.h (num_inputs_agg = 2H)
    params["wh2"], params["bh2"] = lin(ks[6], H, H)
    params["wo"], params["bo"] = lin(ks[7], H, num_out)    # aggregate.linear -> 3 classes
    return params


if __name__ == "__main__":
    vocab_size = 50
    embed_size = 32
    num_hiddens = 32
    batch = 2
    seq_len = 8

    key = jax.random.PRNGKey(0)
    kparam, kprem, khyp = jax.random.split(key, 3)
    params = init_params(kparam, vocab_size, embed_size, num_hiddens)

    premises = jax.random.randint(kprem, (batch, seq_len), 0, vocab_size, dtype=jnp.int32)
    hypotheses = jax.random.randint(khyp, (batch, seq_len), 0, vocab_size, dtype=jnp.int32)

    y_hat = decomposable_attention_forward(premises, hypotheses, params)
    y_hat = jax.block_until_ready(y_hat)
    y_ref = reference_forward(premises, hypotheses, params)
    np.testing.assert_allclose(np.asarray(y_hat), np.asarray(y_ref), rtol=2e-3, atol=2e-3)

    # Also exercise the batch-tiled (multi-step, padded) path on a modest batch.
    kp2, kh2 = jax.random.split(jax.random.PRNGKey(1))
    prem2 = jax.random.randint(kp2, (20, seq_len), 0, vocab_size, dtype=jnp.int32)
    hyp2 = jax.random.randint(kh2, (20, seq_len), 0, vocab_size, dtype=jnp.int32)
    y2 = jax.block_until_ready(
        decomposable_attention_forward(prem2, hyp2, params, batch_tile=8))
    y2_ref = reference_forward(prem2, hyp2, params)
    np.testing.assert_allclose(np.asarray(y2), np.asarray(y2_ref), rtol=2e-3, atol=2e-3)

    print("KERNEL_OK")
</pallas_src>

<mosaic_0001>
module attributes {stable_mosaic.version = 11 : i64} {
  func.func @decomposable_attention_kernel(%arg0: i32, %arg1: memref<2x16x32xf32, #tpu.memory_space<vmem>>, %arg2: memref<32x32xf32, #tpu.memory_space<vmem>>, %arg3: memref<1x32xf32, #tpu.memory_space<vmem>>, %arg4: memref<32x32xf32, #tpu.memory_space<vmem>>, %arg5: memref<1x32xf32, #tpu.memory_space<vmem>>, %arg6: memref<32x32xf32, #tpu.memory_space<vmem>>, %arg7: memref<32x32xf32, #tpu.memory_space<vmem>>, %arg8: memref<1x32xf32, #tpu.memory_space<vmem>>, %arg9: memref<32x32xf32, #tpu.memory_space<vmem>>, %arg10: memref<1x32xf32, #tpu.memory_space<vmem>>, %arg11: memref<32x32xf32, #tpu.memory_space<vmem>>, %arg12: memref<32x32xf32, #tpu.memory_space<vmem>>, %arg13: memref<1x32xf32, #tpu.memory_space<vmem>>, %arg14: memref<32x32xf32, #tpu.memory_space<vmem>>, %arg15: memref<1x32xf32, #tpu.memory_space<vmem>>, %arg16: memref<32x3xf32, #tpu.memory_space<vmem>>, %arg17: memref<1x3xf32, #tpu.memory_space<vmem>>, %arg18: memref<2x3xf32, #tpu.memory_space<vmem>>) attributes {dimension_semantics = [#tpu.dimension_semantics<parallel>], iteration_bounds = array<i64: 1>, scalar_prefetch = 0 : i64, scratch_operands = 0 : i64, tpu.core_type = #tpu.core_type<tc>, window_params = [{transform_indices = @transform_0, window_bounds = array<i64: 2, 16, 32>}, {pipeline_mode = #tpu.pipeline_mode<synchronous>, transform_indices = @transform_1, window_bounds = array<i64: 32, 32>}, {pipeline_mode = #tpu.pipeline_mode<synchronous>, transform_indices = @transform_2, window_bounds = array<i64: 1, 32>}, {pipeline_mode = #tpu.pipeline_mode<synchronous>, transform_indices = @transform_3, window_bounds = array<i64: 32, 32>}, {pipeline_mode = #tpu.pipeline_mode<synchronous>, transform_indices = @transform_4, window_bounds = array<i64: 1, 32>}, {pipeline_mode = #tpu.pipeline_mode<synchronous>, transform_indices = @transform_5, window_bounds = array<i64: 32, 32>}, {pipeline_mode = #tpu.pipeline_mode<synchronous>, transform_indices = @transform_6, window_bounds = array<i64: 32, 32>}, {pipeline_mode = #tpu.pipeline_mode<synchronous>, transform_indices = @transform_7, window_bounds = array<i64: 1, 32>}, {pipeline_mode = #tpu.pipeline_mode<synchronous>, transform_indices = @transform_8, window_bounds = array<i64: 32, 32>}, {pipeline_mode = #tpu.pipeline_mode<synchronous>, transform_indices = @transform_9, window_bounds = array<i64: 1, 32>}, {pipeline_mode = #tpu.pipeline_mode<synchronous>, transform_indices = @transform_10, window_bounds = array<i64: 32, 32>}, {pipeline_mode = #tpu.pipeline_mode<synchronous>, transform_indices = @transform_11, window_bounds = array<i64: 32, 32>}, {pipeline_mode = #tpu.pipeline_mode<synchronous>, transform_indices = @transform_12, window_bounds = array<i64: 1, 32>}, {pipeline_mode = #tpu.pipeline_mode<synchronous>, transform_indices = @transform_13, window_bounds = array<i64: 32, 32>}, {pipeline_mode = #tpu.pipeline_mode<synchronous>, transform_indices = @transform_14, window_bounds = array<i64: 1, 32>}, {pipeline_mode = #tpu.pipeline_mode<synchronous>, transform_indices = @transform_15, window_bounds = array<i64: 32, 3>}, {pipeline_mode = #tpu.pipeline_mode<synchronous>, transform_indices = @transform_16, window_bounds = array<i64: 1, 3>}, {transform_indices = @transform_17, window_bounds = array<i64: 2, 3>}]} {
    %c0 = arith.constant 0 : index
    %c0_0 = arith.constant 0 : index
    %c0_1 = arith.constant 0 : index
    %0 = vector.load %arg1[%c0, %c0_0, %c0_1] : memref<2x16x32xf32, #tpu.memory_space<vmem>>, vector<2x16x32xf32>
    %1 = vector.shape_cast %0 : vector<2x16x32xf32> to vector<32x32xf32>
    %c0_2 = arith.constant 0 : index
    %c0_3 = arith.constant 0 : index
    %2 = vector.load %arg2[%c0_2, %c0_3] : memref<32x32xf32, #tpu.memory_space<vmem>>, vector<32x32xf32>
    %cst = arith.constant dense<0.000000e+00> : vector<32x32xf32>
    %3 = tpu.matmul %1, %2, %cst {dimension_numbers = #tpu.dot_dimension_numbers<[1], [0], [0], [1], [0, 0, 1, 1], [], []>} : vector<32x32xf32>, vector<32x32xf32>, vector<32x32xf32> -> vector<32x32xf32>
    %c0_4 = arith.constant 0 : index
    %c0_5 = arith.constant 0 : index
    %4 = vector.load %arg3[%c0_4, %c0_5] : memref<1x32xf32, #tpu.memory_space<vmem>>, vector<1x32xf32>
    %5 = vector.broadcast %4 : vector<1x32xf32> to vector<32x32xf32>
    %6 = arith.addf %3, %5 : vector<32x32xf32>
    %cst_6 = arith.constant 0.000000e+00 : f32
    %7 = vector.broadcast %cst_6 : f32 to vector<32x32xf32>
    %8 = arith.maximumf %6, %7 : vector<32x32xf32>
    %c0_7 = arith.constant 0 : index
    %c0_8 = arith.constant 0 : index
    %9 = vector.load %arg4[%c0_7, %c0_8] : memref<32x32xf32, #tpu.memory_space<vmem>>, vector<32x32xf32>
    %cst_9 = arith.constant dense<0.000000e+00> : vector<32x32xf32>
    %10 = tpu.matmul %8, %9, %cst_9 {dimension_numbers = #tpu.dot_dimension_numbers<[1], [0], [0], [1], [0, 0, 1, 1], [], []>} : vector<32x32xf32>, vector<32x32xf32>, vector<32x32xf32> -> vector<32x32xf32>
    %c0_10 = arith.constant 0 : index
    %c0_11 = arith.constant 0 : index
    %11 = vector.load %arg5[%c0_10, %c0_11] : memref<1x32xf32, #tpu.memory_space<vmem>>, vector<1x32xf32>
    %12 = vector.broadcast %11 : vector<1x32xf32> to vector<32x32xf32>
    %13 = arith.addf %10, %12 : vector<32x32xf32>
    %cst_12 = arith.constant 0.000000e+00 : f32
    %14 = vector.broadcast %cst_12 : f32 to vector<32x32xf32>
    %15 = arith.maximumf %13, %14 : vector<32x32xf32>
    %16 = vector.shape_cast %15 : vector<32x32xf32> to vector<2x16x32xf32>
    %17 = vector.extract_strided_slice %16 {offsets = [0, 0, 0], sizes = [2, 8, 32], strides = [1, 1, 1]} : vector<2x16x32xf32> to vector<2x8x32xf32>
    %18 = vector.extract_strided_slice %16 {offsets = [0, 8, 0], sizes = [2, 8, 32], strides = [1, 1, 1]} : vector<2x16x32xf32> to vector<2x8x32xf32>
    "tpu.trace_start"() <{level = 10 : i32, message = "bqh,bkh->bqk"}> : () -> ()
    %cst_13 = arith.constant dense<0.000000e+00> : vector<2x8x8xf32>
    %19 = tpu.matmul %17, %18, %cst_13 {dimension_numbers = #tpu.dot_dimension_numbers<[2], [2], [1], [1], [0, 0, 0, 1, 1, 1], [0], [0]>} : vector<2x8x32xf32>, vector<2x8x32xf32>, vector<2x8x8xf32> -> vector<2x8x8xf32>
    "tpu.trace_stop"() : () -> ()
    %20 = vector.extract_strided_slice %0 {offsets = [0, 0, 0], sizes = [2, 8, 32], strides = [1, 1, 1]} : vector<2x16x32xf32> to vector<2x8x32xf32>
    %21 = vector.extract_strided_slice %0 {offsets = [0, 8, 0], sizes = [2, 8, 32], strides = [1, 1, 1]} : vector<2x16x32xf32> to vector<2x8x32xf32>
    %cst_14 = arith.constant dense<0xFF800000> : vector<2x8xf32>
    %22 = vector.multi_reduction <maximumf>, %19, %cst_14 [2] : vector<2x8x8xf32> to vector<2x8xf32>
    %23 = vector.shape_cast %22 : vector<2x8xf32> to vector<2x8x1xf32>
    %24 = vector.broadcast %23 : vector<2x8x1xf32> to vector<2x8x8xf32>
    %25 = arith.subf %19, %24 : vector<2x8x8xf32>
    %26 = math.exp %25 : vector<2x8x8xf32>
    %cst_15 = arith.constant dense<0.000000e+00> : vector<2x8xf32>
    %27 = vector.multi_reduction <add>, %26, %cst_15 [2] : vector<2x8x8xf32> to vector<2x8xf32>
    %28 = vector.shape_cast %27 : vector<2x8xf32> to vector<2x8x1xf32>
    %29 = tpu.reciprocal %28 {approx = true} : vector<2x8x1xf32> -> vector<2x8x1xf32>
    %30 = vector.broadcast %29 : vector<2x8x1xf32> to vector<2x8x8xf32>
    %31 = arith.mulf %26, %30 : vector<2x8x8xf32>
    %cst_16 = arith.constant dense<0xFF800000> : vector<2x8xf32>
    %32 = vector.multi_reduction <maximumf>, %19, %cst_16 [1] : vector<2x8x8xf32> to vector<2x8xf32>
    %33 = vector.shape_cast %32 : vector<2x8xf32> to vector<2x1x8xf32>
    %34 = vector.broadcast %33 : vector<2x1x8xf32> to vector<2x8x8xf32>
    %35 = arith.subf %19, %34 : vector<2x8x8xf32>
    %36 = math.exp %35 : vector<2x8x8xf32>
    %cst_17 = arith.constant dense<0.000000e+00> : vector<2x8xf32>
    %37 = vector.multi_reduction <add>, %36, %cst_17 [1] : vector<2x8x8xf32> to vector<2x8xf32>
    %38 = vector.shape_cast %37 : vector<2x8xf32> to vector<2x1x8xf32>
    %39 = tpu.reciprocal %38 {approx = true} : vector<2x1x8xf32> -> vector<2x1x8xf32>
    %40 = vector.broadcast %39 : vector<2x1x8xf32> to vector<2x8x8xf32>
    %41 = arith.mulf %36, %40 : vector<2x8x8xf32>
    "tpu.trace_start"() <{level = 10 : i32, message = "bqk,bkd->bqd"}> : () -> ()
    %cst_18 = arith.constant dense<0.000000e+00> : vector<2x8x32xf32>
    %42 = tpu.matmul %31, %21, %cst_18 {dimension_numbers = #tpu.dot_dimension_numbers<[2], [1], [1], [2], [0, 0, 0, 1, 1, 2], [0], [0]>} : vector<2x8x8xf32>, vector<2x8x32xf32>, vector<2x8x32xf32> -> vector<2x8x32xf32>
    "tpu.trace_stop"() : () -> ()
    "tpu.trace_start"() <{level = 10 : i32, message = "bqk,bqd->bkd"}> : () -> ()
    %cst_19 = arith.constant dense<0.000000e+00> : vector<2x8x32xf32>
    %43 = tpu.matmul %41, %20, %cst_19 {dimension_numbers = #tpu.dot_dimension_numbers<[1], [1], [2], [2], [0, 0, 0, 2, 1, 2], [0], [0]>} : vector<2x8x8xf32>, vector<2x8x32xf32>, vector<2x8x32xf32> -> vector<2x8x32xf32>
    "tpu.trace_stop"() : () -> ()
    %44 = tpu.concatenate %42, %43 in 1 : vector<2x8x32xf32>, vector<2x8x32xf32> -> vector<2x16x32xf32>
    %45 = vector.shape_cast %44 : vector<2x16x32xf32> to vector<32x32xf32>
    %c0_20 = arith.constant 0 : index
    %c0_21 = arith.constant 0 : index
    %46 = vector.load %arg6[%c0_20, %c0_21] : memref<32x32xf32, #tpu.memory_space<vmem>>, vector<32x32xf32>
    %cst_22 = arith.constant dense<0.000000e+00> : vector<32x32xf32>
    %47 = tpu.matmul %1, %46, %cst_22 {dimension_numbers = #tpu.dot_dimension_numbers<[1], [0], [0], [1], [0, 0, 1, 1], [], []>} : vector<32x32xf32>, vector<32x32xf32>, vector<32x32xf32> -> vector<32x32xf32>
    %c0_23 = arith.constant 0 : index
    %c0_24 = arith.constant 0 : index
    %48 = vector.load %arg7[%c0_23, %c0_24] : memref<32x32xf32, #tpu.memory_space<vmem>>, vector<32x32xf32>
    %cst_25 = arith.constant dense<0.000000e+00> : vector<32x32xf32>
    %49 = tpu.matmul %45, %48, %cst_25 {dimension_numbers = #tpu.dot_dimension_numbers<[1], [0], [0], [1], [0, 0, 1, 1], [], []>} : vector<32x32xf32>, vector<32x32xf32>, vector<32x32xf32> -> vector<32x32xf32>
    %50 = arith.addf %47, %49 : vector<32x32xf32>
    %c0_26 = arith.constant 0 : index
    %c0_27 = arith.constant 0 : index
    %51 = vector.load %arg8[%c0_26, %c0_27] : memref<1x32xf32, #tpu.memory_space<vmem>>, vector<1x32xf32>
    %52 = vector.broadcast %51 : vector<1x32xf32> to vector<32x32xf32>
    %53 = arith.addf %50, %52 : vector<32x32xf32>
    %cst_28 = arith.constant 0.000000e+00 : f32
    %54 = vector.broadcast %cst_28 : f32 to vector<32x32xf32>
    %55 = arith.maximumf %53, %54 : vector<32x32xf32>
    %c0_29 = arith.constant 0 : index
    %c0_30 = arith.constant 0 : index
    %56 = vector.load %arg9[%c0_29, %c0_30] : memref<32x32xf32, #tpu.memory_space<vmem>>, vector<32x32xf32>
    %cst_31 = arith.constant dense<0.000000e+00> : vector<32x32xf32>
    %57 = tpu.matmul %55, %56, %cst_31 {dimension_numbers = #tpu.dot_dimension_numbers<[1], [0], [0], [1], [0, 0, 1, 1], [], []>} : vector<32x32xf32>, vector<32x32xf32>, vector<32x32xf32> -> vector<32x32xf32>
    %c0_32 = arith.constant 0 : index
    %c0_33 = arith.constant 0 : index
    %58 = vector.load %arg10[%c0_32, %c0_33] : memref<1x32xf32, #tpu.memory_space<vmem>>, vector<1x32xf32>
    %59 = vector.broadcast %58 : vector<1x32xf32> to vector<32x32xf32>
    %60 = arith.addf %57, %59 : vector<32x32xf32>
    %cst_34 = arith.constant 0.000000e+00 : f32
    %61 = vector.broadcast %cst_34 : f32 to vector<32x32xf32>
    %62 = arith.maximumf %60, %61 : vector<32x32xf32>
    %63 = vector.shape_cast %62 : vector<32x32xf32> to vector<2x16x32xf32>
    %64 = vector.extract_strided_slice %63 {offsets = [0, 0, 0], sizes = [2, 8, 32], strides = [1, 1, 1]} : vector<2x16x32xf32> to vector<2x8x32xf32>
    %cst_35 = arith.constant dense<0.000000e+00> : vector<2x32xf32>
    %65 = vector.multi_reduction <add>, %64, %cst_35 [1] : vector<2x8x32xf32> to vector<2x32xf32>
    %66 = vector.extract_strided_slice %63 {offsets = [0, 8, 0], sizes = [2, 8, 32], strides = [1, 1, 1]} : vector<2x16x32xf32> to vector<2x8x32xf32>
    %cst_36 = arith.constant dense<0.000000e+00> : vector<2x32xf32>
    %67 = vector.multi_reduction <add>, %66, %cst_36 [1] : vector<2x8x32xf32> to vector<2x32xf32>
    %c0_37 = arith.constant 0 : index
    %c0_38 = arith.constant 0 : index
    %68 = vector.load %arg11[%c0_37, %c0_38] : memref<32x32xf32, #tpu.memory_space<vmem>>, vector<32x32xf32>
    %cst_39 = arith.constant dense<0.000000e+00> : vector<2x32xf32>
    %69 = tpu.matmul %65, %68, %cst_39 {dimension_numbers = #tpu.dot_dimension_numbers<[1], [0], [0], [1], [0, 0, 1, 1], [], []>} : vector<2x32xf32>, vector<32x32xf32>, vector<2x32xf32> -> vector<2x32xf32>
    %c0_40 = arith.constant 0 : index
    %c0_41 = arith.constant 0 : index
    %70 = vector.load %arg12[%c0_40, %c0_41] : memref<32x32xf32, #tpu.memory_space<vmem>>, vector<32x32xf32>
    %cst_42 = arith.constant dense<0.000000e+00> : vector<2x32xf32>
    %71 = tpu.matmul %67, %70, %cst_42 {dimension_numbers = #tpu.dot_dimension_numbers<[1], [0], [0], [1], [0, 0, 1, 1], [], []>} : vector<2x32xf32>, vector<32x32xf32>, vector<2x32xf32> -> vector<2x32xf32>
    %72 = arith.addf %69, %71 : vector<2x32xf32>
    %c0_43 = arith.constant 0 : index
    %c0_44 = arith.constant 0 : index
    %73 = vector.load %arg13[%c0_43, %c0_44] : memref<1x32xf32, #tpu.memory_space<vmem>>, vector<1x32xf32>
    %74 = vector.broadcast %73 : vector<1x32xf32> to vector<2x32xf32>
    %75 = arith.addf %72, %74 : vector<2x32xf32>
    %cst_45 = arith.constant 0.000000e+00 : f32
    %76 = vector.broadcast %cst_45 : f32 to vector<2x32xf32>
    %77 = arith.maximumf %75, %76 : vector<2x32xf32>
    %c0_46 = arith.constant 0 : index
    %c0_47 = arith.constant 0 : index
    %78 = vector.load %arg14[%c0_46, %c0_47] : memref<32x32xf32, #tpu.memory_space<vmem>>, vector<32x32xf32>
    %cst_48 = arith.constant dense<0.000000e+00> : vector<2x32xf32>
    %79 = tpu.matmul %77, %78, %cst_48 {dimension_numbers = #tpu.dot_dimension_numbers<[1], [0], [0], [1], [0, 0, 1, 1], [], []>} : vector<2x32xf32>, vector<32x32xf32>, vector<2x32xf32> -> vector<2x32xf32>
    %c0_49 = arith.constant 0 : index
    %c0_50 = arith.constant 0 : index
    %80 = vector.load %arg15[%c0_49, %c0_50] : memref<1x32xf32, #tpu.memory_space<vmem>>, vector<1x32xf32>
    %81 = vector.broadcast %80 : vector<1x32xf32> to vector<2x32xf32>
    %82 = arith.addf %79, %81 : vector<2x32xf32>
    %cst_51 = arith.constant 0.000000e+00 : f32
    %83 = vector.broadcast %cst_51 : f32 to vector<2x32xf32>
    %84 = arith.maximumf %82, %83 : vector<2x32xf32>
    %c0_52 = arith.constant 0 : index
    %c0_53 = arith.constant 0 : index
    %85 = vector.load %arg16[%c0_52, %c0_53] : memref<32x3xf32, #tpu.memory_space<vmem>>, vector<32x3xf32>
    %cst_54 = arith.constant dense<0.000000e+00> : vector<2x3xf32>
    %86 = tpu.matmul %84, %85, %cst_54 {dimension_numbers = #tpu.dot_dimension_numbers<[1], [0], [0], [1], [0, 0, 1, 1], [], []>} : vector<2x32xf32>, vector<32x3xf32>, vector<2x3xf32> -> vector<2x3xf32>
    %c0_55 = arith.constant 0 : index
    %c0_56 = arith.constant 0 : index
    %87 = vector.load %arg17[%c0_55, %c0_56] : memref<1x3xf32, #tpu.memory_space<vmem>>, vector<1x3xf32>
    %88 = vector.broadcast %87 : vector<1x3xf32> to vector<2x3xf32>
    %89 = arith.addf %86, %88 : vector<2x3xf32>
    %c0_57 = arith.constant 0 : index
    %c0_58 = arith.constant 0 : index
    %90 = vector.load %arg18[%c0_57, %c0_58] : memref<2x3xf32, #tpu.memory_space<vmem>>, vector<2x3xf32>
    tpu.vector_store %arg18[%c0_57, %c0_58], %89 {strides = array<i32>} : memref<2x3xf32, #tpu.memory_space<vmem>>, vector<2x3xf32>,
    return
  }
  func.func @transform_0(%arg0: i32) -> (i32, i32, i32) {
    %c0_i32 = arith.constant 0 : i32
    %c0_i32_0 = arith.constant 0 : i32
    %c0_i32_1 = arith.constant 0 : i32
    return %arg0, %c0_i32, %c0_i32_0 : i32, i32, i32
  }
  func.func @transform_1(%arg0: i32) -> (i32, i32) {
    %c0_i32 = arith.constant 0 : i32
    %c0_i32_0 = arith.constant 0 : i32
    %c0_i32_1 = arith.constant 0 : i32
    return %c0_i32, %c0_i32_0 : i32, i32
  }
  func.func @transform_2(%arg0: i32) -> (i32, i32) {
    %c0_i32 = arith.constant 0 : i32
    %c0_i32_0 = arith.constant 0 : i32
    %c0_i32_1 = arith.constant 0 : i32
    return %c0_i32, %c0_i32_0 : i32, i32
  }
  func.func @transform_3(%arg0: i32) -> (i32, i32) {
    %c0_i32 = arith.constant 0 : i32
    %c0_i32_0 = arith.constant 0 : i32
    %c0_i32_1 = arith.constant 0 : i32
    return %c0_i32, %c0_i32_0 : i32, i32
  }
  func.func @transform_4(%arg0: i32) -> (i32, i32) {
    %c0_i32 = arith.constant 0 : i32
    %c0_i32_0 = arith.constant 0 : i32
    %c0_i32_1 = arith.constant 0 : i32
    return %c0_i32, %c0_i32_0 : i32, i32
  }
  func.func @transform_5(%arg0: i32) -> (i32, i32) {
    %c0_i32 = arith.constant 0 : i32
    %c0_i32_0 = arith.constant 0 : i32
    %c0_i32_1 = arith.constant 0 : i32
    return %c0_i32, %c0_i32_0 : i32, i32
  }
  func.func @transform_6(%arg0: i32) -> (i32, i32) {
    %c0_i32 = arith.constant 0 : i32
    %c0_i32_0 = arith.constant 0 : i32
    %c0_i32_1 = arith.constant 0 : i32
    return %c0_i32, %c0_i32_0 : i32, i32
  }
  func.func @transform_7(%arg0: i32) -> (i32, i32) {
    %c0_i32 = arith.constant 0 : i32
    %c0_i32_0 = arith.constant 0 : i32
    %c0_i32_1 = arith.constant 0 : i32
    return %c0_i32, %c0_i32_0 : i32, i32
  }
  func.func @transform_8(%arg0: i32) -> (i32, i32) {
    %c0_i32 = arith.constant 0 : i32
    %c0_i32_0 = arith.constant 0 : i32
    %c0_i32_1 = arith.constant 0 : i32
    return %c0_i32, %c0_i32_0 : i32, i32
  }
  func.func @transform_9(%arg0: i32) -> (i32, i32) {
    %c0_i32 = arith.constant 0 : i32
    %c0_i32_0 = arith.constant 0 : i32
    %c0_i32_1 = arith.constant 0 : i32
    return %c0_i32, %c0_i32_0 : i32, i32
  }
  func.func @transform_10(%arg0: i32) -> (i32, i32) {
    %c0_i32 = arith.constant 0 : i32
    %c0_i32_0 = arith.constant 0 : i32
    %c0_i32_1 = arith.constant 0 : i32
    return %c0_i32, %c0_i32_0 : i32, i32
  }
  func.func @transform_11(%arg0: i32) -> (i32, i32) {
    %c0_i32 = arith.constant 0 : i32
    %c0_i32_0 = arith.constant 0 : i32
    %c0_i32_1 = arith.constant 0 : i32
    return %c0_i32, %c0_i32_0 : i32, i32
  }
  func.func @transform_12(%arg0: i32) -> (i32, i32) {
    %c0_i32 = arith.constant 0 : i32
    %c0_i32_0 = arith.constant 0 : i32
    %c0_i32_1 = arith.constant 0 : i32
    return %c0_i32, %c0_i32_0 : i32, i32
  }
  func.func @transform_13(%arg0: i32) -> (i32, i32) {
    %c0_i32 = arith.constant 0 : i32
    %c0_i32_0 = arith.constant 0 : i32
    %c0_i32_1 = arith.constant 0 : i32
    return %c0_i32, %c0_i32_0 : i32, i32
  }
  func.func @transform_14(%arg0: i32) -> (i32, i32) {
    %c0_i32 = arith.constant 0 : i32
    %c0_i32_0 = arith.constant 0 : i32
    %c0_i32_1 = arith.constant 0 : i32
    return %c0_i32, %c0_i32_0 : i32, i32
  }
  func.func @transform_15(%arg0: i32) -> (i32, i32) {
    %c0_i32 = arith.constant 0 : i32
    %c0_i32_0 = arith.constant 0 : i32
    %c0_i32_1 = arith.constant 0 : i32
    return %c0_i32, %c0_i32_0 : i32, i32
  }
  func.func @transform_16(%arg0: i32) -> (i32, i32) {
    %c0_i32 = arith.constant 0 : i32
    %c0_i32_0 = arith.constant 0 : i32
    %c0_i32_1 = arith.constant 0 : i32
    return %c0_i32, %c0_i32_0 : i32, i32
  }
  func.func @transform_17(%arg0: i32) -> (i32, i32) {
    %c0_i32 = arith.constant 0 : i32
    %c0_i32_0 = arith.constant 0 : i32
    return %arg0, %c0_i32 : i32, i32
  }
}

</mosaic_0001>

<llo_original>
// kernel: tpu_custom_call.1
$region0: #{tpu_custom_call.1}
  #allocation0 [shape = 'u32[]', space=smem, size = 0x4, offset = 0x4, fixed_abs, tag = 'smem constant byte address 0x4 - core index']
  #allocation1 [shape = 'u32[144,128]{1,0:T(1,128)}', space=vmem, size = 0x12000, scoped, tag = 'internal scratch']
  %s0 = inlined_call_operand.vmem [shape: f32[2,16,32], index: 0, kind: input, shape index: {}]
  %s1 = inlined_call_operand.hbm [shape: f32[32,32], index: 1, kind: input, shape index: {}]
  %s2 = inlined_call_operand.vmem [shape: f32[1,32], index: 2, kind: input, shape index: {}]
  %s3 = inlined_call_operand.hbm [shape: f32[32,32], index: 3, kind: input, shape index: {}]
  %s4 = inlined_call_operand.vmem [shape: f32[1,32], index: 4, kind: input, shape index: {}]
  %s5 = inlined_call_operand.hbm [shape: f32[32,32], index: 5, kind: input, shape index: {}]
  %s6 = inlined_call_operand.hbm [shape: f32[32,32], index: 6, kind: input, shape index: {}]
  %s7 = inlined_call_operand.hbm [shape: f32[1,32], index: 7, kind: input, shape index: {}]
  %s8 = inlined_call_operand.vmem [shape: f32[32,32], index: 8, kind: input, shape index: {}]
  %s9 = inlined_call_operand.hbm [shape: f32[1,32], index: 9, kind: input, shape index: {}]
  %s10 = inlined_call_operand.hbm [shape: f32[32,32], index: 10, kind: input, shape index: {}]
  %s11 = inlined_call_operand.hbm [shape: f32[32,32], index: 11, kind: input, shape index: {}]
  %s12 = inlined_call_operand.vmem [shape: f32[1,32], index: 12, kind: input, shape index: {}]
  %s13 = inlined_call_operand.hbm [shape: f32[32,32], index: 13, kind: input, shape index: {}]
  %s14 = inlined_call_operand.vmem [shape: f32[1,32], index: 14, kind: input, shape index: {}]
  %s15 = inlined_call_operand.vmem [shape: f32[32,3], index: 15, kind: input, shape index: {}]
  %s16 = inlined_call_operand.vmem [shape: f32[1,3], index: 16, kind: input, shape index: {}]
  %s17 = inlined_call_operand.hbm [shape: f32[2,3], index: 17, kind: output, shape index: {}]
  %s18 = sld [smem:[#allocation0]]
  $region114: #{tpu_custom_call.1} parent=0
    _
  %s20 = ssub.s32 1, %s18
  %s21 = scalar_select 0, %s20, %s18
  $region1: #{tpu_custom_call.1} parent=0
    #allocation2 [shape = 'u8[16384]{0}', space=vmem, size = 0x4000, scoped, tag = 'input window, operand 1, single buffered']
    #allocation3 [shape = 's32[1]{0}', space=sflag, size = 0x4, scoped, tag = 'scoped memory for tpu_custom_call.1']
    #allocation4 [shape = 's32[1]{0}', space=sflag, size = 0x4, scoped, tag = 'scoped memory for tpu_custom_call.1']
    #allocation5 [shape = 'u8[16384]{0}', space=vmem, size = 0x4000, scoped, tag = 'input window, operand 3, single buffered']
    #allocation6 [shape = 's32[1]{0}', space=sflag, size = 0x4, scoped, tag = 'scoped memory for tpu_custom_call.1']
    #allocation7 [shape = 'u8[16384]{0}', space=vmem, size = 0x4000, scoped, tag = 'input window, operand 5, single buffered']
    #allocation8 [shape = 'u8[16384]{0}', space=vmem, size = 0x4000, scoped, tag = 'input window, operand 6, single buffered']
    #allocation9 [shape = 's32[1]{0}', space=sflag, size = 0x4, scoped, tag = 'scoped memory for tpu_custom_call.1']
    #allocation10 [shape = 'u8[512]{0}', space=vmem, size = 0x400, scoped, tag = 'input window, operand 7, single buffered']
    #allocation11 [shape = 'u8[512]{0}', space=vmem, size = 0x400, scoped, tag = 'input window, operand 9, single buffered']
    #allocation12 [shape = 's32[1]{0}', space=sflag, size = 0x4, scoped, tag = 'scoped memory for tpu_custom_call.1']
    #allocation13 [shape = 'u8[16384]{0}', space=vmem, size = 0x4000, scoped, tag = 'input window, operand 10, single buffered']
    #allocation14 [shape = 'u8[16384]{0}', space=vmem, size = 0x4000, scoped, tag = 'input window, operand 11, single buffered']
    #allocation15 [shape = 's32[1]{0}', space=sflag, size = 0x4, scoped, tag = 'scoped memory for tpu_custom_call.1']
    #allocation16 [shape = 'u8[16384]{0}', space=vmem, size = 0x4000, scoped, tag = 'input window, operand 13, single buffered']
    #allocation17 [shape = 'u8[1024]{0}', space=vmem, size = 0x400, scoped, tag = 'output window, operand 0, single buffered']
    %22 = vsyncpa [#allocation3], 0
    %23 = vsyncpa [#allocation6], 0
    %24 = vsyncpa [#allocation9], 0
    %25 = vsyncpa [#allocation12], 0
    %26 = vsyncpa [#allocation15], 0
    %27 = vsyncpa [#allocation4], 0
    // Predicated region
    $region2: #{tpu_custom_call.1} parent=1 // pred_check
      _
    $region3: #{tpu_custom_call.1} parent=1 // pred_check_branch
      %29 = sbr.rel (0) target = $region5
    $region4: #{tpu_custom_call.1} parent=1 // pred_region
      _
    $region5: #{tpu_custom_call.1} parent=1 // pred_fallthru
      _
    // Predicated region
    $region6: #{tpu_custom_call.1} parent=1 // pred_check
      _
    $region7: #{tpu_custom_call.1} parent=1 // pred_check_branch
      %31 = sbr.rel (0) target = $region9
    $region8: #{tpu_custom_call.1} parent=1 // pred_region
      %s33 = ssub.s32 512, 512
      %34 = vsyncadd [#allocation3], %s33
      %s35 = sshll.u32 [#allocation2], 4
      %s36 = int_to_ptr.vmem [resolvable:$true] %s35
      %41 = dma.hbm_to_vmem [thread:$0]  %s1, 512, %s36, [#allocation3], 128, 128, 8
    $region9: #{tpu_custom_call.1} parent=1 // pred_fallthru
      _
    // Predicated region
    $region10: #{tpu_custom_call.1} parent=1 // pred_check
      _
    $region11: #{tpu_custom_call.1} parent=1 // pred_check_branch
      %43 = sbr.rel (0) target = $region13
    $region12: #{tpu_custom_call.1} parent=1 // pred_region
      _
    $region13: #{tpu_custom_call.1} parent=1 // pred_fallthru
      _
    // Predicated region
    $region14: #{tpu_custom_call.1} parent=1 // pred_check
      _
    $region15: #{tpu_custom_call.1} parent=1 // pred_check_branch
      %45 = sbr.rel (0) target = $region17
    $region16: #{tpu_custom_call.1} parent=1 // pred_region
      %s47 = ssub.s32 512, 512
      %48 = vsyncadd [#allocation6], %s47
      %s49 = sshll.u32 [#allocation5], 4
      %s50 = int_to_ptr.vmem [resolvable:$true] %s49
      %55 = dma.hbm_to_vmem [thread:$0]  %s3, 512, %s50, [#allocation6], 128, 128, 8
    $region17: #{tpu_custom_call.1} parent=1 // pred_fallthru
      _
    // Predicated region
    $region18: #{tpu_custom_call.1} parent=1 // pred_check
      _
    $region19: #{tpu_custom_call.1} parent=1 // pred_check_branch
      %57 = sbr.rel (0) target = $region21
    $region20: #{tpu_custom_call.1} parent=1 // pred_region
      _
    $region21: #{tpu_custom_call.1} parent=1 // pred_fallthru
      _
    // Predicated region
    $region22: #{tpu_custom_call.1} parent=1 // pred_check
      _
    $region23: #{tpu_custom_call.1} parent=1 // pred_check_branch
      %59 = sbr.rel (0) target = $region25
    $region24: #{tpu_custom_call.1} parent=1 // pred_region
      %s61 = ssub.s32 512, 512
      %62 = vsyncadd [#allocation6], %s61
      %s63 = sshll.u32 [#allocation7], 4
      %s64 = int_to_ptr.vmem [resolvable:$true] %s63
      %69 = dma.hbm_to_vmem [thread:$0]  %s5, 512, %s64, [#allocation6], 128, 128, 8
    $region25: #{tpu_custom_call.1} parent=1 // pred_fallthru
      _
    // Predicated region
    $region26: #{tpu_custom_call.1} parent=1 // pred_check
      _
    $region27: #{tpu_custom_call.1} parent=1 // pred_check_branch
      %71 = sbr.rel (0) target = $region29
    $region28: #{tpu_custom_call.1} parent=1 // pred_region
      %s73 = ssub.s32 512, 512
      %74 = vsyncadd [#allocation9], %s73
      %s75 = sshll.u32 [#allocation8], 4
      %s76 = int_to_ptr.vmem [resolvable:$true] %s75
      %81 = dma.hbm_to_vmem [thread:$0]  %s6, 512, %s76, [#allocation9], 128, 128, 8
    $region29: #{tpu_custom_call.1} parent=1 // pred_fallthru
      _
    // Predicated region
    $region30: #{tpu_custom_call.1} parent=1 // pred_check
      _
    $region31: #{tpu_custom_call.1} parent=1 // pred_check_branch
      %83 = sbr.rel (0) target = $region33
    $region32: #{tpu_custom_call.1} parent=1 // pred_region
      %s85 = ssub.s32 16, 16
      %86 = vsyncadd [#allocation9], %s85
      %s88 = sshll.u32 [#allocation10], 4
      %s89 = int_to_ptr.vmem [resolvable:$true] %s88
      %91 = dma.hbm_to_vmem [thread:$0]  %s7, 16, %s89, [#allocation9]
    $region33: #{tpu_custom_call.1} parent=1 // pred_fallthru
      _
    // Predicated region
    $region34: #{tpu_custom_call.1} parent=1 // pred_check
      _
    $region35: #{tpu_custom_call.1} parent=1 // pred_check_branch
      %93 = sbr.rel (0) target = $region37
    $region36: #{tpu_custom_call.1} parent=1 // pred_region
      _
    $region37: #{tpu_custom_call.1} parent=1 // pred_fallthru
      _
    // Predicated region
    $region38: #{tpu_custom_call.1} parent=1 // pred_check
      _
    $region39: #{tpu_custom_call.1} parent=1 // pred_check_branch
      %95 = sbr.rel (0) target = $region41
    $region40: #{tpu_custom_call.1} parent=1 // pred_region
      %s97 = ssub.s32 16, 16
      %98 = vsyncadd [#allocation12], %s97
      %s100 = sshll.u32 [#allocation11], 4
      %s101 = int_to_ptr.vmem [resolvable:$true] %s100
      %103 = dma.hbm_to_vmem [thread:$0]  %s9, 16, %s101, [#allocation12]
    $region41: #{tpu_custom_call.1} parent=1 // pred_fallthru
      _
    // Predicated region
    $region42: #{tpu_custom_call.1} parent=1 // pred_check
      _
    $region43: #{tpu_custom_call.1} parent=1 // pred_check_branch
      %105 = sbr.rel (0) target = $region45
    $region44: #{tpu_custom_call.1} parent=1 // pred_region
      %s107 = ssub.s32 512, 512
      %108 = vsyncadd [#allocation12], %s107
      %s109 = sshll.u32 [#allocation13], 4
      %s110 = int_to_ptr.vmem [resolvable:$true] %s109
      %115 = dma.hbm_to_vmem [thread:$0]  %s10, 512, %s110, [#allocation12], 128, 128, 8
    $region45: #{tpu_custom_call.1} parent=1 // pred_fallthru
      _
    // Predicated region
    $region46: #{tpu_custom_call.1} parent=1 // pred_check
      _
    $region47: #{tpu_custom_call.1} parent=1 // pred_check_branch
      %117 = sbr.rel (0) target = $region49
    $region48: #{tpu_custom_call.1} parent=1 // pred_region
      %s119 = ssub.s32 512, 512
      %120 = vsyncadd [#allocation15], %s119
      %s121 = sshll.u32 [#allocation14], 4
      %s122 = int_to_ptr.vmem [resolvable:$true] %s121
      %127 = dma.hbm_to_vmem [thread:$0]  %s11, 512, %s122, [#allocation15], 128, 128, 8
    $region49: #{tpu_custom_call.1} parent=1 // pred_fallthru
      _
    // Predicated region
    $region50: #{tpu_custom_call.1} parent=1 // pred_check
      _
    $region51: #{tpu_custom_call.1} parent=1 // pred_check_branch
      %129 = sbr.rel (0) target = $region53
    $region52: #{tpu_custom_call.1} parent=1 // pred_region
      _
    $region53: #{tpu_custom_call.1} parent=1 // pred_fallthru
      _
    // Predicated region
    $region54: #{tpu_custom_call.1} parent=1 // pred_check
      _
    $region55: #{tpu_custom_call.1} parent=1 // pred_check_branch
      %131 = sbr.rel (0) target = $region57
    $region56: #{tpu_custom_call.1} parent=1 // pred_region
      %s133 = ssub.s32 512, 512
      %134 = vsyncadd [#allocation15], %s133
      %s135 = sshll.u32 [#allocation16], 4
      %s136 = int_to_ptr.vmem [resolvable:$true] %s135
      %141 = dma.hbm_to_vmem [thread:$0]  %s13, 512, %s136, [#allocation15], 128, 128, 8
    $region57: #{tpu_custom_call.1} parent=1 // pred_fallthru
      _
    // Predicated region
    $region58: #{tpu_custom_call.1} parent=1 // pred_check
      _
    $region59: #{tpu_custom_call.1} parent=1 // pred_check_branch
      %143 = sbr.rel (0) target = $region61
    $region60: #{tpu_custom_call.1} parent=1 // pred_region
      _
    $region61: #{tpu_custom_call.1} parent=1 // pred_fallthru
      _
    // Predicated region
    $region62: #{tpu_custom_call.1} parent=1 // pred_check
      _
    $region63: #{tpu_custom_call.1} parent=1 // pred_check_branch
      %145 = sbr.rel (0) target = $region65
    $region64: #{tpu_custom_call.1} parent=1 // pred_region
      _
    $region65: #{tpu_custom_call.1} parent=1 // pred_fallthru
      _
    // Predicated region
    $region66: #{tpu_custom_call.1} parent=1 // pred_check
      _
    $region67: #{tpu_custom_call.1} parent=1 // pred_check_branch
      %147 = sbr.rel (0) target = $region69
    $region68: #{tpu_custom_call.1} parent=1 // pred_region
      _
    $region69: #{tpu_custom_call.1} parent=1 // pred_fallthru
      _
    // Predicated region
    $region70: #{tpu_custom_call.1} parent=1 // pred_check
      _
    $region71: #{tpu_custom_call.1} parent=1 // pred_check_branch
      %149 = sbr.rel (0) target = $region73
    $region72: #{tpu_custom_call.1} parent=1 // pred_region
      %150 = dma.done [#allocation3], 512
    $region73: #{tpu_custom_call.1} parent=1 // pred_fallthru
      _
    // Predicated region
    $region74: #{tpu_custom_call.1} parent=1 // pred_check
      _
    $region75: #{tpu_custom_call.1} parent=1 // pred_check_branch
      %152 = sbr.rel (0) target = $region77
    $region76: #{tpu_custom_call.1} parent=1 // pred_region
      %153 = dma.done [#allocation6], 512
    $region77: #{tpu_custom_call.1} parent=1 // pred_fallthru
      _
    // Predicated region
    $region78: #{tpu_custom_call.1} parent=1 // pred_check
      _
    $region79: #{tpu_custom_call.1} parent=1 // pred_check_branch
      %155 = sbr.rel (0) target = $region81
    $region80: #{tpu_custom_call.1} parent=1 // pred_region
      %156 = dma.done [#allocation6], 512
    $region81: #{tpu_custom_call.1} parent=1 // pred_fallthru
      _
    // Predicated region
    $region82: #{tpu_custom_call.1} parent=1 // pred_check
      _
    $region83: #{tpu_custom_call.1} parent=1 // pred_check_branch
      %158 = sbr.rel (0) target = $region85
    $region84: #{tpu_custom_call.1} parent=1 // pred_region
      %159 = dma.done [#allocation9], 512
    $region85: #{tpu_custom_call.1} parent=1 // pred_fallthru
      _
    // Predicated region
    $region86: #{tpu_custom_call.1} parent=1 // pred_check
      _
    $region87: #{tpu_custom_call.1} parent=1 // pred_check_branch
      %161 = sbr.rel (0) target = $region89
    $region88: #{tpu_custom_call.1} parent=1 // pred_region
      %162 = dma.done [#allocation9], 16
    $region89: #{tpu_custom_call.1} parent=1 // pred_fallthru
      _
    // Predicated region
    $region90: #{tpu_custom_call.1} parent=1 // pred_check
      _
    $region91: #{tpu_custom_call.1} parent=1 // pred_check_branch
      %164 = sbr.rel (0) target = $region93
    $region92: #{tpu_custom_call.1} parent=1 // pred_region
      %165 = dma.done [#allocation12], 16
    $region93: #{tpu_custom_call.1} parent=1 // pred_fallthru
      _
    // Predicated region
    $region94: #{tpu_custom_call.1} parent=1 // pred_check
      _
    $region95: #{tpu_custom_call.1} parent=1 // pred_check_branch
      %167 = sbr.rel (0) target = $region97
    $region96: #{tpu_custom_call.1} parent=1 // pred_region
      %168 = dma.done [#allocation12], 512
    $region97: #{tpu_custom_call.1} parent=1 // pred_fallthru
      _
    // Predicated region
    $region98: #{tpu_custom_call.1} parent=1 // pred_check
      _
    $region99: #{tpu_custom_call.1} parent=1 // pred_check_branch
      %170 = sbr.rel (0) target = $region101
    $region100: #{tpu_custom_call.1} parent=1 // pred_region
      %171 = dma.done [#allocation15], 512
    $region101: #{tpu_custom_call.1} parent=1 // pred_fallthru
      _
    // Predicated region
    $region102: #{tpu_custom_call.1} parent=1 // pred_check
      _
    $region103: #{tpu_custom_call.1} parent=1 // pred_check_branch
      %173 = sbr.rel (0) target = $region105
    $region104: #{tpu_custom_call.1} parent=1 // pred_region
      %174 = dma.done [#allocation15], 512
    $region105: #{tpu_custom_call.1} parent=1 // pred_fallthru
      _
    %v175 = vld [vmem:[%s0] sm:$0xff]
    %v176 = vld [vmem:[%s0 + $0x8] sm:$0xff]
    %v177 = vld [vmem:[%s0 + $0x10] sm:$0xff]
    %v178 = vld [vmem:[%s0 + $0x18] sm:$0xff]
    %v179 = vld [vmem:[#allocation2] sm:$0xff]
    %v180 = vld [vmem:[#allocation2 + $0x8] sm:$0xff]
    %v181 = vld [vmem:[#allocation2 + $0x10] sm:$0xff]
    %v182 = vld [vmem:[#allocation2 + $0x18] sm:$0xff]
    %v183 = vld [vmem:[%s2] sm:$0x1]
    %v185 = vlaneseq
    %v186 = vshrl.u32 %v185, 7
    %v187 = vsub.s32 0, %v186
    %v188 = vrot.slane %v183, %v187
    %vm190 = vcmask 261120
    %v192 = vsel %vm190, %v175, 0
    %v195 = vsel %vm190, %v176, 0
    %v198 = vsel %vm190, %v177, 0
    %v201 = vsel %vm190, %v178, 0
    %203 = vmatprep.subr.mxu0 0.0
    %204 = vmatpush1.msra.mxu0 %v179
    %205 = vmatprep.subr.mxu0 0.0
    %206 = vmatpush1.msra.mxu0 %v180
    %207 = vmatprep.subr.mxu0 0.0
    %208 = vmatpush1.msra.mxu0 %v181
    %209 = vmatprep.subr.mxu0 0.0
    %210 = vmatpush1.msra.mxu0 %v182
    %211 = vmatprep.subr.mxu0 0.0
    %212 = vmatpush1.msra.mxu0 0.0
    %213 = vmatprep.subr.mxu0 0.0
    %214 = vmatpush1.msra.mxu0 0.0
    %215 = vmatprep.subr.mxu0 0.0
    %216 = vmatpush1.msra.mxu0 0.0
    %217 = vmatprep.subr.mxu0 0.0
    %218 = vmatpush1.msra.mxu0 0.0
    %219 = vmatprep.subr.mxu0 0.0
    %220 = vmatpush1.msra.mxu0 0.0
    %221 = vmatprep.subr.mxu0 0.0
    %222 = vmatpush1.msra.mxu0 0.0
    %223 = vmatprep.subr.mxu0 0.0
    %224 = vmatpush1.msra.mxu0 0.0
    %225 = vmatprep.subr.mxu0 0.0
    %226 = vmatpush1.msra.mxu0 0.0
    %227 = vmatprep.subr.mxu0 0.0
    %228 = vmatpush1.msra.mxu0 0.0
    %229 = vmatprep.subr.mxu0 0.0
    %230 = vmatpush1.msra.mxu0 0.0
    %231 = vmatprep.subr.mxu0 0.0
    %232 = vmatpush1.msra.mxu0 0.0
    %233 = vmatprep.subr.mxu0 0.0
    %234 = vmatpush1.msra.mxu0 0.0
    %235 = vmatprep.subr.mxu0 0.0
    %236 = vmatpush1.msra.mxu0 0.0
    %237 = vmatprep.subr.mxu0 0.0
    %238 = vmatpush1.msra.mxu0 0.0
    %239 = vmatprep.subr.mxu0 0.0
    %240 = vmatpush1.msra.mxu0 0.0
    %241 = vmatprep.subr.mxu0 0.0
    %242 = vmatpush1.msra.mxu0 0.0
    %243 = vmatprep.subr.mxu0 0.0
    %244 = vmatpush1.msra.mxu0 0.0
    %245 = vmatprep.subr.mxu0 0.0
    %246 = vmatpush1.msra.mxu0 0.0
    %247 = vmatprep.subr.mxu0 0.0
    %248 = vmatpush1.msra.mxu0 0.0
    %249 = vmatprep.subr.mxu0 0.0
    %250 = vmatpush1.msra.mxu0 0.0
    %251 = vmatprep.subr.mxu0 0.0
    %252 = vmatpush1.msra.mxu0 0.0
    %253 = vmatprep.subr.mxu0 0.0
    %254 = vmatpush1.msra.mxu0 0.0
    %255 = vmatprep.subr.mxu0 0.0
    %256 = vmatpush1.msra.mxu0 0.0
    %257 = vmatprep.subr.mxu0 0.0
    %258 = vmatpush1.msra.mxu0 0.0
    %259 = vmatprep.subr.mxu0 0.0
    %260 = vmatpush1.msra.mxu0 0.0
    %261 = vmatprep.subr.mxu0 0.0
    %262 = vmatpush1.msra.mxu0 0.0
    %263 = vmatprep.subr.mxu0 0.0
    %264 = vmatpush1.msra.mxu0 0.0
    %265 = vmatprep.subr.mxu0 0.0
    %266 = vmatpush1.msra.mxu0 0.0
    %267 = vmatprep.mubr.f32.mxu0 0.0
    %268 = vmatmul.mubr.f32.gmra.mrb[0].mxu0 %v192
    %v269 = vpop.f32.mrb[0].mxu0
    %v270 = vadd.f32 %v188, %v269
    %v271 = vpop.f32.mrb[0].mxu0
    %272 = vmatprep.mubr.f32.mxu0 0.0
    %273 = vmatmul.mubr.f32.gmra.mrb[0].mxu0 %v195
    %v274 = vpop.f32.mrb[0].mxu0
    %v275 = vadd.f32 %v188, %v274
    %v276 = vpop.f32.mrb[0].mxu0
    %277 = vmatprep.mubr.f32.mxu0 0.0
    %278 = vmatmul.mubr.f32.gmra.mrb[0].mxu0 %v198
    %v279 = vpop.f32.mrb[0].mxu0
    %v280 = vadd.f32 %v188, %v279
    %v281 = vpop.f32.mrb[0].mxu0
    %282 = vmatprep.mubr.f32.mxu0 0.0
    %283 = vmatmul.mubr.f32.gmra.mrb[0].mxu0 %v201
    %v284 = vpop.f32.mrb[0].mxu0
    %v285 = vadd.f32 %v188, %v284
    %v286 = vpop.f32.mrb[0].mxu0
    %287 = vdwg.mxu0
    %v288 = vmax.f32 %v270, 0.0
    %v289 = vmax.f32 %v275, 0.0
    %v290 = vmax.f32 %v280, 0.0
    %v291 = vmax.f32 %v285, 0.0
    %v292 = vld [vmem:[#allocation5] sm:$0xff]
    %v293 = vld [vmem:[#allocation5 + $0x8] sm:$0xff]
    %v294 = vld [vmem:[#allocation5 + $0x10] sm:$0xff]
    %v295 = vld [vmem:[#allocation5 + $0x18] sm:$0xff]
    %v296 = vld [vmem:[%s4] sm:$0x1]
    %v298 = vlaneseq
    %v299 = vshrl.u32 %v298, 7
    %v300 = vsub.s32 0, %v299
    %v301 = vrot.slane %v296, %v300
    %v304 = vsel %vm190, %v288, 0
    %v307 = vsel %vm190, %v289, 0
    %v310 = vsel %vm190, %v290, 0
    %v313 = vsel %vm190, %v291, 0
    %315 = vmatprep.subr.mxu0 0.0
    %316 = vmatpush1.msra.mxu0 %v292
    %317 = vmatprep.subr.mxu0 0.0
    %318 = vmatpush1.msra.mxu0 %v293
    %319 = vmatprep.subr.mxu0 0.0
    %320 = vmatpush1.msra.mxu0 %v294
    %321 = vmatprep.subr.mxu0 0.0
    %322 = vmatpush1.msra.mxu0 %v295
    %323 = vmatprep.subr.mxu0 0.0
    %324 = vmatpush1.msra.mxu0 0.0
    %325 = vmatprep.subr.mxu0 0.0
    %326 = vmatpush1.msra.mxu0 0.0
    %327 = vmatprep.subr.mxu0 0.0
    %328 = vmatpush1.msra.mxu0 0.0
    %329 = vmatprep.subr.mxu0 0.0
    %330 = vmatpush1.msra.mxu0 0.0
    %331 = vmatprep.subr.mxu0 0.0
    %332 = vmatpush1.msra.mxu0 0.0
    %333 = vmatprep.subr.mxu0 0.0
    %334 = vmatpush1.msra.mxu0 0.0
    %335 = vmatprep.subr.mxu0 0.0
    %336 = vmatpush1.msra.mxu0 0.0
    %337 = vmatprep.subr.mxu0 0.0
    %338 = vmatpush1.msra.mxu0 0.0
    %339 = vmatprep.subr.mxu0 0.0
    %340 = vmatpush1.msra.mxu0 0.0
    %341 = vmatprep.subr.mxu0 0.0
    %342 = vmatpush1.msra.mxu0 0.0
    %343 = vmatprep.subr.mxu0 0.0
    %344 = vmatpush1.msra.mxu0 0.0
    %345 = vmatprep.subr.mxu0 0.0
    %346 = vmatpush1.msra.mxu0 0.0
    %347 = vmatprep.subr.mxu0 0.0
    %348 = vmatpush1.msra.mxu0 0.0
    %349 = vmatprep.subr.mxu0 0.0
    %350 = vmatpush1.msra.mxu0 0.0
    %351 = vmatprep.subr.mxu0 0.0
    %352 = vmatpush1.msra.mxu0 0.0
    %353 = vmatprep.subr.mxu0 0.0
    %354 = vmatpush1.msra.mxu0 0.0
    %355 = vmatprep.subr.mxu0 0.0
    %356 = vmatpush1.msra.mxu0 0.0
    %357 = vmatprep.subr.mxu0 0.0
    %358 = vmatpush1.msra.mxu0 0.0
    %359 = vmatprep.subr.mxu0 0.0
    %360 = vmatpush1.msra.mxu0 0.0
    %361 = vmatprep.subr.mxu0 0.0
    %362 = vmatpush1.msra.mxu0 0.0
    %363 = vmatprep.subr.mxu0 0.0
    %364 = vmatpush1.msra.mxu0 0.0
    %365 = vmatprep.subr.mxu0 0.0
    %366 = vmatpush1.msra.mxu0 0.0
    %367 = vmatprep.subr.mxu0 0.0
    %368 = vmatpush1.msra.mxu0 0.0
    %369 = vmatprep.subr.mxu0 0.0
    %370 = vmatpush1.msra.mxu0 0.0
    %371 = vmatprep.subr.mxu0 0.0
    %372 = vmatpush1.msra.mxu0 0.0
    %373 = vmatprep.subr.mxu0 0.0
    %374 = vmatpush1.msra.mxu0 0.0
    %375 = vmatprep.subr.mxu0 0.0
    %376 = vmatpush1.msra.mxu0 0.0
    %377 = vmatprep.subr.mxu0 0.0
    %378 = vmatpush1.msra.mxu0 0.0
    %379 = vmatprep.mubr.f32.mxu0 0.0
    %380 = vmatmul.mubr.f32.gmra.mrb[0].mxu0 %v304
    %v381 = vpop.f32.mrb[0].mxu0
    %v382 = vadd.f32 %v301, %v381
    %v383 = vpop.f32.mrb[0].mxu0
    %384 = vmatprep.mubr.f32.mxu0 0.0
    %385 = vmatmul.mubr.f32.gmra.mrb[0].mxu0 %v307
    %v386 = vpop.f32.mrb[0].mxu0
    %v387 = vadd.f32 %v301, %v386
    %v388 = vpop.f32.mrb[0].mxu0
    %389 = vmatprep.mubr.f32.mxu0 0.0
    %390 = vmatmul.mubr.f32.gmra.mrb[0].mxu0 %v310
    %v391 = vpop.f32.mrb[0].mxu0
    %v392 = vadd.f32 %v301, %v391
    %v393 = vpop.f32.mrb[0].mxu0
    %394 = vmatprep.mubr.f32.mxu0 0.0
    %395 = vmatmul.mubr.f32.gmra.mrb[0].mxu0 %v313
    %v396 = vpop.f32.mrb[0].mxu0
    %v397 = vadd.f32 %v301, %v396
    %v398 = vpop.f32.mrb[0].mxu0
    %399 = vdwg.mxu0
    %v400 = vmax.f32 %v382, 0.0
    %v401 = vmax.f32 %v387, 0.0
    %v402 = vmax.f32 %v392, 0.0
    %v403 = vmax.f32 %v397, 0.0
    %v405 = vsel %vm190, %v400, 0
    %v408 = vsel %vm190, %v401, 0
    %410 = vmatprep.subr.mxu0 0.0
    %411 = vmatpush1.xpose.msra.mxu0 %v408
    %412 = vmatprep.subr.mxu0 0.0
    %413 = vmatpush1.xpose.msra.mxu0 0.0
    %414 = vmatprep.subr.mxu0 0.0
    %415 = vmatpush1.xpose.msra.mxu0 0.0
    %416 = vmatprep.subr.mxu0 0.0
    %417 = vmatpush1.xpose.msra.mxu0 0.0
    %418 = vmatprep.subr.mxu0 0.0
    %419 = vmatpush1.xpose.msra.mxu0 0.0
    %420 = vmatprep.subr.mxu0 0.0
    %421 = vmatpush1.xpose.msra.mxu0 0.0
    %422 = vmatprep.subr.mxu0 0.0
    %423 = vmatpush1.xpose.msra.mxu0 0.0
    %424 = vmatprep.subr.mxu0 0.0
    %425 = vmatpush1.xpose.msra.mxu0 0.0
    %426 = vmatprep.subr.mxu0 0.0
    %427 = vmatpush1.xpose.msra.mxu0 0.0
    %428 = vmatprep.subr.mxu0 0.0
    %429 = vmatpush1.xpose.msra.mxu0 0.0
    %430 = vmatprep.subr.mxu0 0.0
    %431 = vmatpush1.xpose.msra.mxu0 0.0
    %432 = vmatprep.subr.mxu0 0.0
    %433 = vmatpush1.xpose.msra.mxu0 0.0
    %434 = vmatprep.subr.mxu0 0.0
    %435 = vmatpush1.xpose.msra.mxu0 0.0
    %436 = vmatprep.subr.mxu0 0.0
    %437 = vmatpush1.xpose.msra.mxu0 0.0
    %438 = vmatprep.subr.mxu0 0.0
    %439 = vmatpush1.xpose.msra.mxu0 0.0
    %440 = vmatprep.subr.mxu0 0.0
    %441 = vmatpush1.xpose.msra.mxu0 0.0
    %442 = vmatprep.subr.mxu0 0.0
    %443 = vmatpush1.xpose.msra.mxu0 0.0
    %444 = vmatprep.subr.mxu0 0.0
    %445 = vmatpush1.xpose.msra.mxu0 0.0
    %446 = vmatprep.subr.mxu0 0.0
    %447 = vmatpush1.xpose.msra.mxu0 0.0
    %448 = vmatprep.subr.mxu0 0.0
    %449 = vmatpush1.xpose.msra.mxu0 0.0
    %450 = vmatprep.subr.mxu0 0.0
    %451 = vmatpush1.xpose.msra.mxu0 0.0
    %452 = vmatprep.subr.mxu0 0.0
    %453 = vmatpush1.xpose.msra.mxu0 0.0
    %454 = vmatprep.subr.mxu0 0.0
    %455 = vmatpush1.xpose.msra.mxu0 0.0
    %456 = vmatprep.subr.mxu0 0.0
    %457 = vmatpush1.xpose.msra.mxu0 0.0
    %458 = vmatprep.subr.mxu0 0.0
    %459 = vmatpush1.xpose.msra.mxu0 0.0
    %460 = vmatprep.subr.mxu0 0.0
    %461 = vmatpush1.xpose.msra.mxu0 0.0
    %462 = vmatprep.subr.mxu0 0.0
    %463 = vmatpush1.xpose.msra.mxu0 0.0
    %464 = vmatprep.subr.mxu0 0.0
    %465 = vmatpush1.xpose.msra.mxu0 0.0
    %466 = vmatprep.subr.mxu0 0.0
    %467 = vmatpush1.xpose.msra.mxu0 0.0
    %468 = vmatprep.subr.mxu0 0.0
    %469 = vmatpush1.xpose.msra.mxu0 0.0
    %470 = vmatprep.subr.mxu0 0.0
    %471 = vmatpush1.xpose.msra.mxu0 0.0
    %472 = vmatprep.subr.mxu0 0.0
    %473 = vmatpush1.xpose.msra.mxu0 0.0
    %474 = vmatprep.mubr.f32.mxu0 0.0
    %475 = vmatmul.mubr.f32.gmra.mrb[0].mxu0 %v405
    %v476 = vpop.f32.mrb[0].mxu0
    %v477 = vadd.f32 0.0, %v476
    %v478 = vpop.f32.mrb[0].mxu0
    %479 = vdwg.mxu0
    %v481 = vsel %vm190, %v402, 0
    %v484 = vsel %vm190, %v403, 0
    %486 = vmatprep.subr.mxu0 0.0
    %487 = vmatpush1.xpose.msra.mxu0 %v484
    %488 = vmatprep.subr.mxu0 0.0
    %489 = vmatpush1.xpose.msra.mxu0 0.0
    %490 = vmatprep.subr.mxu0 0.0
    %491 = vmatpush1.xpose.msra.mxu0 0.0
    %492 = vmatprep.subr.mxu0 0.0
    %493 = vmatpush1.xpose.msra.mxu0 0.0
    %494 = vmatprep.subr.mxu0 0.0
    %495 = vmatpush1.xpose.msra.mxu0 0.0
    %496 = vmatprep.subr.mxu0 0.0
    %497 = vmatpush1.xpose.msra.mxu0 0.0
    %498 = vmatprep.subr.mxu0 0.0
    %499 = vmatpush1.xpose.msra.mxu0 0.0
    %500 = vmatprep.subr.mxu0 0.0
    %501 = vmatpush1.xpose.msra.mxu0 0.0
    %502 = vmatprep.subr.mxu0 0.0
    %503 = vmatpush1.xpose.msra.mxu0 0.0
    %504 = vmatprep.subr.mxu0 0.0
    %505 = vmatpush1.xpose.msra.mxu0 0.0
    %506 = vmatprep.subr.mxu0 0.0
    %507 = vmatpush1.xpose.msra.mxu0 0.0
    %508 = vmatprep.subr.mxu0 0.0
    %509 = vmatpush1.xpose.msra.mxu0 0.0
    %510 = vmatprep.subr.mxu0 0.0
    %511 = vmatpush1.xpose.msra.mxu0 0.0
    %512 = vmatprep.subr.mxu0 0.0
    %513 = vmatpush1.xpose.msra.mxu0 0.0
    %514 = vmatprep.subr.mxu0 0.0
    %515 = vmatpush1.xpose.msra.mxu0 0.0
    %516 = vmatprep.subr.mxu0 0.0
    %517 = vmatpush1.xpose.msra.mxu0 0.0
    %518 = vmatprep.subr.mxu0 0.0
    %519 = vmatpush1.xpose.msra.mxu0 0.0
    %520 = vmatprep.subr.mxu0 0.0
    %521 = vmatpush1.xpose.msra.mxu0 0.0
    %522 = vmatprep.subr.mxu0 0.0
    %523 = vmatpush1.xpose.msra.mxu0 0.0
    %524 = vmatprep.subr.mxu0 0.0
    %525 = vmatpush1.xpose.msra.mxu0 0.0
    %526 = vmatprep.subr.mxu0 0.0
    %527 = vmatpush1.xpose.msra.mxu0 0.0
    %528 = vmatprep.subr.mxu0 0.0
    %529 = vmatpush1.xpose.msra.mxu0 0.0
    %530 = vmatprep.subr.mxu0 0.0
    %531 = vmatpush1.xpose.msra.mxu0 0.0
    %532 = vmatprep.subr.mxu0 0.0
    %533 = vmatpush1.xpose.msra.mxu0 0.0
    %534 = vmatprep.subr.mxu0 0.0
    %535 = vmatpush1.xpose.msra.mxu0 0.0
    %536 = vmatprep.subr.mxu0 0.0
    %537 = vmatpush1.xpose.msra.mxu0 0.0
    %538 = vmatprep.subr.mxu0 0.0
    %539 = vmatpush1.xpose.msra.mxu0 0.0
    %540 = vmatprep.subr.mxu0 0.0
    %541 = vmatpush1.xpose.msra.mxu0 0.0
    %542 = vmatprep.subr.mxu0 0.0
    %543 = vmatpush1.xpose.msra.mxu0 0.0
    %544 = vmatprep.subr.mxu0 0.0
    %545 = vmatpush1.xpose.msra.mxu0 0.0
    %546 = vmatprep.subr.mxu0 0.0
    %547 = vmatpush1.xpose.msra.mxu0 0.0
    %548 = vmatprep.subr.mxu0 0.0
    %549 = vmatpush1.xpose.msra.mxu0 0.0
    %550 = vmatprep.mubr.f32.mxu0 0.0
    %551 = vmatmul.mubr.f32.gmra.mrb[0].mxu0 %v481
    %v552 = vpop.f32.mrb[0].mxu0
    %v553 = vadd.f32 0.0, %v552
    %v554 = vpop.f32.mrb[0].mxu0
    %555 = vdwg.mxu0
    %vm556 = vcmask 64512
    %v557 = vsel %vm556, %v477, -inf
    %558 = vmax.xlane.f32.xlu0 %v557
    %v559 = vpop.xlane.xlu0 %558
    %v560 = vsel %vm556, %v553, -inf
    %561 = vmax.xlane.f32.xlu0 %v560
    %v562 = vpop.xlane.xlu0 %561
    %v563 = vsub.f32 %v477, %v559
    %v564 = vsub.f32 %v553, %v562
    %v565 = vmul.f32 %v563, 1.442695
    %v566 = vpow.pop %v565
    %v567 = vmul.f32 %v564, 1.442695
    %v568 = vpow.pop %v567
    %v569 = vsel %vm556, %v566, 0.0
    %570 = vadd.xlane.f32.xlu0 %v569
    %v571 = vpop.xlane.xlu0 %570
    %v572 = vsel %vm556, %v568, 0.0
    %573 = vadd.xlane.f32.xlu0 %v572
    %v574 = vpop.xlane.xlu0 %573
    %v575 = vrcp.pop %v571
    %v576 = vrcp.pop %v574
    %v577 = vmul.f32 %v566, %v575
    %v578 = vmul.f32 %v568, %v576
    %v579 = vrot.slane %v557, 4
    %v580 = vmax.f32 %v557, %v579
    %v581 = vrot.slane %v580, 2
    %v582 = vmax.f32 %v580, %v581
    %v583 = vrot.slane %v582, 1
    %v584 = vmax.f32 %v582, %v583
    %v585 = vrot.slane %v560, 4
    %v586 = vmax.f32 %v560, %v585
    %v587 = vrot.slane %v586, 2
    %v588 = vmax.f32 %v586, %v587
    %v589 = vrot.slane %v588, 1
    %v590 = vmax.f32 %v588, %v589
    %v591 = vsub.f32 %v477, %v584
    %v592 = vsub.f32 %v553, %v590
    %v593 = vmul.f32 %v591, 1.442695
    %v594 = vpow.pop %v593
    %v595 = vmul.f32 %v592, 1.442695
    %v596 = vpow.pop %v595
    %v597 = vsel %vm556, %v594, 0.0
    %v598 = vrot.slane %v597, 4
    %v599 = vadd.f32 %v597, %v598
    %v600 = vrot.slane %v599, 2
    %v601 = vadd.f32 %v599, %v600
    %v602 = vrot.slane %v601, 1
    %v603 = vadd.f32 %v601, %v602
    %v604 = vsel %vm556, %v596, 0.0
    %v605 = vrot.slane %v604, 4
    %v606 = vadd.f32 %v604, %v605
    %v607 = vrot.slane %v606, 2
    %v608 = vadd.f32 %v606, %v607
    %v609 = vrot.slane %v608, 1
    %v610 = vadd.f32 %v608, %v609
    %v611 = vrcp.pop %v603
    %v612 = vrcp.pop %v610
    %v613 = vmul.f32 %v594, %v611
    %v614 = vmul.f32 %v596, %v612
    %v616 = vsel %vm556, %v577, 0
    %618 = vmatprep.subr.mxu0 0.0
    %619 = vmatpush1.msra.mxu0 %v176
    %620 = vmatprep.subr.mxu0 0.0
    %621 = vmatpush1.msra.mxu0 0.0
    %622 = vmatprep.subr.mxu0 0.0
    %623 = vmatpush1.msra.mxu0 0.0
    %624 = vmatprep.subr.mxu0 0.0
    %625 = vmatpush1.msra.mxu0 0.0
    %626 = vmatprep.subr.mxu0 0.0
    %627 = vmatpush1.msra.mxu0 0.0
    %628 = vmatprep.subr.mxu0 0.0
    %629 = vmatpush1.msra.mxu0 0.0
    %630 = vmatprep.subr.mxu0 0.0
    %631 = vmatpush1.msra.mxu0 0.0
    %632 = vmatprep.subr.mxu0 0.0
    %633 = vmatpush1.msra.mxu0 0.0
    %634 = vmatprep.subr.mxu0 0.0
    %635 = vmatpush1.msra.mxu0 0.0
    %636 = vmatprep.subr.mxu0 0.0
    %637 = vmatpush1.msra.mxu0 0.0
    %638 = vmatprep.subr.mxu0 0.0
    %639 = vmatpush1.msra.mxu0 0.0
    %640 = vmatprep.subr.mxu0 0.0
    %641 = vmatpush1.msra.mxu0 0.0
    %642 = vmatprep.subr.mxu0 0.0
    %643 = vmatpush1.msra.mxu0 0.0
    %644 = vmatprep.subr.mxu0 0.0
    %645 = vmatpush1.msra.mxu0 0.0
    %646 = vmatprep.subr.mxu0 0.0
    %647 = vmatpush1.msra.mxu0 0.0
    %648 = vmatprep.subr.mxu0 0.0
    %649 = vmatpush1.msra.mxu0 0.0
    %650 = vmatprep.subr.mxu0 0.0
    %651 = vmatpush1.msra.mxu0 0.0
    %652 = vmatprep.subr.mxu0 0.0
    %653 = vmatpush1.msra.mxu0 0.0
    %654 = vmatprep.subr.mxu0 0.0
    %655 = vmatpush1.msra.mxu0 0.0
    %656 = vmatprep.subr.mxu0 0.0
    %657 = vmatpush1.msra.mxu0 0.0
    %658 = vmatprep.subr.mxu0 0.0
    %659 = vmatpush1.msra.mxu0 0.0
    %660 = vmatprep.subr.mxu0 0.0
    %661 = vmatpush1.msra.mxu0 0.0
    %662 = vmatprep.subr.mxu0 0.0
    %663 = vmatpush1.msra.mxu0 0.0
    %664 = vmatprep.subr.mxu0 0.0
    %665 = vmatpush1.msra.mxu0 0.0
    %666 = vmatprep.subr.mxu0 0.0
    %667 = vmatpush1.msra.mxu0 0.0
    %668 = vmatprep.subr.mxu0 0.0
    %669 = vmatpush1.msra.mxu0 0.0
    %670 = vmatprep.subr.mxu0 0.0
    %671 = vmatpush1.msra.mxu0 0.0
    %672 = vmatprep.subr.mxu0 0.0
    %673 = vmatpush1.msra.mxu0 0.0
    %674 = vmatprep.subr.mxu0 0.0
    %675 = vmatpush1.msra.mxu0 0.0
    %676 = vmatprep.subr.mxu0 0.0
    %677 = vmatpush1.msra.mxu0 0.0
    %678 = vmatprep.subr.mxu0 0.0
    %679 = vmatpush1.msra.mxu0 0.0
    %680 = vmatprep.subr.mxu0 0.0
    %681 = vmatpush1.msra.mxu0 0.0
    %682 = vmatprep.mubr.f32.mxu0 0.0
    %683 = vmatmul.mubr.f32.gmra.mrb[0].mxu0 %v616
    %v684 = vpop.f32.mrb[0].mxu0
    %v685 = vadd.f32 0.0, %v684
    %v686 = vpop.f32.mrb[0].mxu0
    %687 = vdwg.mxu0
    %v689 = vsel %vm556, %v578, 0
    %691 = vmatprep.subr.mxu0 0.0
    %692 = vmatpush1.msra.mxu0 %v178
    %693 = vmatprep.subr.mxu0 0.0
    %694 = vmatpush1.msra.mxu0 0.0
    %695 = vmatprep.subr.mxu0 0.0
    %696 = vmatpush1.msra.mxu0 0.0
    %697 = vmatprep.subr.mxu0 0.0
    %698 = vmatpush1.msra.mxu0 0.0
    %699 = vmatprep.subr.mxu0 0.0
    %700 = vmatpush1.msra.mxu0 0.0
    %701 = vmatprep.subr.mxu0 0.0
    %702 = vmatpush1.msra.mxu0 0.0
    %703 = vmatprep.subr.mxu0 0.0
    %704 = vmatpush1.msra.mxu0 0.0
    %705 = vmatprep.subr.mxu0 0.0
    %706 = vmatpush1.msra.mxu0 0.0
    %707 = vmatprep.subr.mxu0 0.0
    %708 = vmatpush1.msra.mxu0 0.0
    %709 = vmatprep.subr.mxu0 0.0
    %710 = vmatpush1.msra.mxu0 0.0
    %711 = vmatprep.subr.mxu0 0.0
    %712 = vmatpush1.msra.mxu0 0.0
    %713 = vmatprep.subr.mxu0 0.0
    %714 = vmatpush1.msra.mxu0 0.0
    %715 = vmatprep.subr.mxu0 0.0
    %716 = vmatpush1.msra.mxu0 0.0
    %717 = vmatprep.subr.mxu0 0.0
    %718 = vmatpush1.msra.mxu0 0.0
    %719 = vmatprep.subr.mxu0 0.0
    %720 = vmatpush1.msra.mxu0 0.0
    %721 = vmatprep.subr.mxu0 0.0
    %722 = vmatpush1.msra.mxu0 0.0
    %723 = vmatprep.subr.mxu0 0.0
    %724 = vmatpush1.msra.mxu0 0.0
    %725 = vmatprep.subr.mxu0 0.0
    %726 = vmatpush1.msra.mxu0 0.0
    %727 = vmatprep.subr.mxu0 0.0
    %728 = vmatpush1.msra.mxu0 0.0
    %729 = vmatprep.subr.mxu0 0.0
    %730 = vmatpush1.msra.mxu0 0.0
    %731 = vmatprep.subr.mxu0 0.0
    %732 = vmatpush1.msra.mxu0 0.0
    %733 = vmatprep.subr.mxu0 0.0
    %734 = vmatpush1.msra.mxu0 0.0
    %735 = vmatprep.subr.mxu0 0.0
    %736 = vmatpush1.msra.mxu0 0.0
    %737 = vmatprep.subr.mxu0 0.0
    %738 = vmatpush1.msra.mxu0 0.0
    %739 = vmatprep.subr.mxu0 0.0
    %740 = vmatpush1.msra.mxu0 0.0
    %741 = vmatprep.subr.mxu0 0.0
    %742 = vmatpush1.msra.mxu0 0.0
    %743 = vmatprep.subr.mxu0 0.0
    %744 = vmatpush1.msra.mxu0 0.0
    %745 = vmatprep.subr.mxu0 0.0
    %746 = vmatpush1.msra.mxu0 0.0
    %747 = vmatprep.subr.mxu0 0.0
    %748 = vmatpush1.msra.mxu0 0.0
    %749 = vmatprep.subr.mxu0 0.0
    %750 = vmatpush1.msra.mxu0 0.0
    %751 = vmatprep.subr.mxu0 0.0
    %752 = vmatpush1.msra.mxu0 0.0
    %753 = vmatprep.subr.mxu0 0.0
    %754 = vmatpush1.msra.mxu0 0.0
    %755 = vmatprep.mubr.f32.mxu0 0.0
    %756 = vmatmul.mubr.f32.gmra.mrb[0].mxu0 %v689
    %v757 = vpop.f32.mrb[0].mxu0
    %v758 = vadd.f32 0.0, %v757
    %v759 = vpop.f32.mrb[0].mxu0
    %760 = vdwg.mxu0
    %761 = vxpose.xlu0.b32.start [1/16] %v613, 128
    %762 = vxpose.xlu0.b32.cont [2/16] 0.0, 128
    %763 = vxpose.xlu0.b32.cont [3/16] 0.0, 128
    %764 = vxpose.xlu0.b32.cont [4/16] 0.0, 128
    %765 = vxpose.xlu0.b32.cont [5/16] 0.0, 128
    %766 = vxpose.xlu0.b32.cont [6/16] 0.0, 128
    %767 = vxpose.xlu0.b32.cont [7/16] 0.0, 128
    %768 = vxpose.xlu0.b32.cont [8/16] 0.0, 128
    %769 = vxpose.xlu0.b32.cont [9/16] 0.0, 128
    %770 = vxpose.xlu0.b32.cont [10/16] 0.0, 128
    %771 = vxpose.xlu0.b32.cont [11/16] 0.0, 128
    %772 = vxpose.xlu0.b32.cont [12/16] 0.0, 128
    %773 = vxpose.xlu0.b32.cont [13/16] 0.0, 128
    %774 = vxpose.xlu0.b32.cont [14/16] 0.0, 128
    %775 = vxpose.xlu0.b32.cont [15/16] 0.0, 128
    %776 = vxpose.xlu0.b32.end [16/16] 0.0, 128
    %v777 = vpop.trf.xlu0
    %v778 = vpop.trf.xlu0
    %v779 = vpop.trf.xlu0
    %v780 = vpop.trf.xlu0
    %v781 = vpop.trf.xlu0
    %v782 = vpop.trf.xlu0
    %v783 = vpop.trf.xlu0
    %v784 = vpop.trf.xlu0
    %v785 = vpop.trf.xlu0
    %v786 = vpop.trf.xlu0
    %v787 = vpop.trf.xlu0
    %v788 = vpop.trf.xlu0
    %v789 = vpop.trf.xlu0
    %v790 = vpop.trf.xlu0
    %v791 = vpop.trf.xlu0
    %v792 = vpop.trf.xlu0
    %v794 = vsel %vm556, %v777, 0
    %796 = vmatprep.subr.mxu0 0.0
    %797 = vmatpush1.msra.mxu0 %v175
    %798 = vmatprep.subr.mxu0 0.0
    %799 = vmatpush1.msra.mxu0 0.0
    %800 = vmatprep.subr.mxu0 0.0
    %801 = vmatpush1.msra.mxu0 0.0
    %802 = vmatprep.subr.mxu0 0.0
    %803 = vmatpush1.msra.mxu0 0.0
    %804 = vmatprep.subr.mxu0 0.0
    %805 = vmatpush1.msra.mxu0 0.0
    %806 = vmatprep.subr.mxu0 0.0
    %807 = vmatpush1.msra.mxu0 0.0
    %808 = vmatprep.subr.mxu0 0.0
    %809 = vmatpush1.msra.mxu0 0.0
    %810 = vmatprep.subr.mxu0 0.0
    %811 = vmatpush1.msra.mxu0 0.0
    %812 = vmatprep.subr.mxu0 0.0
    %813 = vmatpush1.msra.mxu0 0.0
    %814 = vmatprep.subr.mxu0 0.0
    %815 = vmatpush1.msra.mxu0 0.0
    %816 = vmatprep.subr.mxu0 0.0
    %817 = vmatpush1.msra.mxu0 0.0
    %818 = vmatprep.subr.mxu0 0.0
    %819 = vmatpush1.msra.mxu0 0.0
    %820 = vmatprep.subr.mxu0 0.0
    %821 = vmatpush1.msra.mxu0 0.0
    %822 = vmatprep.subr.mxu0 0.0
    %823 = vmatpush1.msra.mxu0 0.0
    %824 = vmatprep.subr.mxu0 0.0
    %825 = vmatpush1.msra.mxu0 0.0
    %826 = vmatprep.subr.mxu0 0.0
    %827 = vmatpush1.msra.mxu0 0.0
    %828 = vmatprep.subr.mxu0 0.0
    %829 = vmatpush1.msra.mxu0 0.0
    %830 = vmatprep.subr.mxu0 0.0
    %831 = vmatpush1.msra.mxu0 0.0
    %832 = vmatprep.subr.mxu0 0.0
    %833 = vmatpush1.msra.mxu0 0.0
    %834 = vmatprep.subr.mxu0 0.0
    %835 = vmatpush1.msra.mxu0 0.0
    %836 = vmatprep.subr.mxu0 0.0
    %837 = vmatpush1.msra.mxu0 0.0
    %838 = vmatprep.subr.mxu0 0.0
    %839 = vmatpush1.msra.mxu0 0.0
    %840 = vmatprep.subr.mxu0 0.0
    %841 = vmatpush1.msra.mxu0 0.0
    %842 = vmatprep.subr.mxu0 0.0
    %843 = vmatpush1.msra.mxu0 0.0
    %844 = vmatprep.subr.mxu0 0.0
    %845 = vmatpush1.msra.mxu0 0.0
    %846 = vmatprep.subr.mxu0 0.0
    %847 = vmatpush1.msra.mxu0 0.0
    %848 = vmatprep.subr.mxu0 0.0
    %849 = vmatpush1.msra.mxu0 0.0
    %850 = vmatprep.subr.mxu0 0.0
    %851 = vmatpush1.msra.mxu0 0.0
    %852 = vmatprep.subr.mxu0 0.0
    %853 = vmatpush1.msra.mxu0 0.0
    %854 = vmatprep.subr.mxu0 0.0
    %855 = vmatpush1.msra.mxu0 0.0
    %856 = vmatprep.subr.mxu0 0.0
    %857 = vmatpush1.msra.mxu0 0.0
    %858 = vmatprep.subr.mxu0 0.0
    %859 = vmatpush1.msra.mxu0 0.0
    %860 = vmatprep.mubr.f32.mxu0 0.0
    %861 = vmatmul.mubr.f32.gmra.mrb[0].mxu0 %v794
    %v862 = vpop.f32.mrb[0].mxu0
    %v863 = vadd.f32 0.0, %v862
    %v864 = vpop.f32.mrb[0].mxu0
    %865 = vdwg.mxu0
    %866 = vxpose.xlu0.b32.start [1/16] %v614, 128
    %867 = vxpose.xlu0.b32.cont [2/16] 0.0, 128
    %868 = vxpose.xlu0.b32.cont [3/16] 0.0, 128
    %869 = vxpose.xlu0.b32.cont [4/16] 0.0, 128
    %870 = vxpose.xlu0.b32.cont [5/16] 0.0, 128
    %871 = vxpose.xlu0.b32.cont [6/16] 0.0, 128
    %872 = vxpose.xlu0.b32.cont [7/16] 0.0, 128
    %873 = vxpose.xlu0.b32.cont [8/16] 0.0, 128
    %874 = vxpose.xlu0.b32.cont [9/16] 0.0, 128
    %875 = vxpose.xlu0.b32.cont [10/16] 0.0, 128
    %876 = vxpose.xlu0.b32.cont [11/16] 0.0, 128
    %877 = vxpose.xlu0.b32.cont [12/16] 0.0, 128
    %878 = vxpose.xlu0.b32.cont [13/16] 0.0, 128
    %879 = vxpose.xlu0.b32.cont [14/16] 0.0, 128
    %880 = vxpose.xlu0.b32.cont [15/16] 0.0, 128
    %881 = vxpose.xlu0.b32.end [16/16] 0.0, 128
    %v882 = vpop.trf.xlu0
    %v883 = vpop.trf.xlu0
    %v884 = vpop.trf.xlu0
    %v885 = vpop.trf.xlu0
    %v886 = vpop.trf.xlu0
    %v887 = vpop.trf.xlu0
    %v888 = vpop.trf.xlu0
    %v889 = vpop.trf.xlu0
    %v890 = vpop.trf.xlu0
    %v891 = vpop.trf.xlu0
    %v892 = vpop.trf.xlu0
    %v893 = vpop.trf.xlu0
    %v894 = vpop.trf.xlu0
    %v895 = vpop.trf.xlu0
    %v896 = vpop.trf.xlu0
    %v897 = vpop.trf.xlu0
    %v899 = vsel %vm556, %v882, 0
    %901 = vmatprep.subr.mxu0 0.0
    %902 = vmatpush1.msra.mxu0 %v177
    %903 = vmatprep.subr.mxu0 0.0
    %904 = vmatpush1.msra.mxu0 0.0
    %905 = vmatprep.subr.mxu0 0.0
    %906 = vmatpush1.msra.mxu0 0.0
    %907 = vmatprep.subr.mxu0 0.0
    %908 = vmatpush1.msra.mxu0 0.0
    %909 = vmatprep.subr.mxu0 0.0
    %910 = vmatpush1.msra.mxu0 0.0
    %911 = vmatprep.subr.mxu0 0.0
    %912 = vmatpush1.msra.mxu0 0.0
    %913 = vmatprep.subr.mxu0 0.0
    %914 = vmatpush1.msra.mxu0 0.0
    %915 = vmatprep.subr.mxu0 0.0
    %916 = vmatpush1.msra.mxu0 0.0
    %917 = vmatprep.subr.mxu0 0.0
    %918 = vmatpush1.msra.mxu0 0.0
    %919 = vmatprep.subr.mxu0 0.0
    %920 = vmatpush1.msra.mxu0 0.0
    %921 = vmatprep.subr.mxu0 0.0
    %922 = vmatpush1.msra.mxu0 0.0
    %923 = vmatprep.subr.mxu0 0.0
    %924 = vmatpush1.msra.mxu0 0.0
    %925 = vmatprep.subr.mxu0 0.0
    %926 = vmatpush1.msra.mxu0 0.0
    %927 = vmatprep.subr.mxu0 0.0
    %928 = vmatpush1.msra.mxu0 0.0
    %929 = vmatprep.subr.mxu0 0.0
    %930 = vmatpush1.msra.mxu0 0.0
    %931 = vmatprep.subr.mxu0 0.0
    %932 = vmatpush1.msra.mxu0 0.0
    %933 = vmatprep.subr.mxu0 0.0
    %934 = vmatpush1.msra.mxu0 0.0
    %935 = vmatprep.subr.mxu0 0.0
    %936 = vmatpush1.msra.mxu0 0.0
    %937 = vmatprep.subr.mxu0 0.0
    %938 = vmatpush1.msra.mxu0 0.0
    %939 = vmatprep.subr.mxu0 0.0
    %940 = vmatpush1.msra.mxu0 0.0
    %941 = vmatprep.subr.mxu0 0.0
    %942 = vmatpush1.msra.mxu0 0.0
    %943 = vmatprep.subr.mxu0 0.0
    %944 = vmatpush1.msra.mxu0 0.0
    %945 = vmatprep.subr.mxu0 0.0
    %946 = vmatpush1.msra.mxu0 0.0
    %947 = vmatprep.subr.mxu0 0.0
    %948 = vmatpush1.msra.mxu0 0.0
    %949 = vmatprep.subr.mxu0 0.0
    %950 = vmatpush1.msra.mxu0 0.0
    %951 = vmatprep.subr.mxu0 0.0
    %952 = vmatpush1.msra.mxu0 0.0
    %953 = vmatprep.subr.mxu0 0.0
    %954 = vmatpush1.msra.mxu0 0.0
    %955 = vmatprep.subr.mxu0 0.0
    %956 = vmatpush1.msra.mxu0 0.0
    %957 = vmatprep.subr.mxu0 0.0
    %958 = vmatpush1.msra.mxu0 0.0
    %959 = vmatprep.subr.mxu0 0.0
    %960 = vmatpush1.msra.mxu0 0.0
    %961 = vmatprep.subr.mxu0 0.0
    %962 = vmatpush1.msra.mxu0 0.0
    %963 = vmatprep.subr.mxu0 0.0
    %964 = vmatpush1.msra.mxu0 0.0
    %965 = vmatprep.mubr.f32.mxu0 0.0
    %966 = vmatmul.mubr.f32.gmra.mrb[0].mxu0 %v899
    %v967 = vpop.f32.mrb[0].mxu0
    %v968 = vadd.f32 0.0, %v967
    %v969 = vpop.f32.mrb[0].mxu0
    %970 = vdwg.mxu0
    %v971 = vld [vmem:[#allocation7] sm:$0xff]
    %v972 = vld [vmem:[#allocation7 + $0x8] sm:$0xff]
    %v973 = vld [vmem:[#allocation7 + $0x10] sm:$0xff]
    %v974 = vld [vmem:[#allocation7 + $0x18] sm:$0xff]
    %v975 = vld [vmem:[#allocation8] sm:$0xff]
    %v976 = vld [vmem:[#allocation8 + $0x8] sm:$0xff]
    %v977 = vld [vmem:[#allocation8 + $0x10] sm:$0xff]
    %v978 = vld [vmem:[#allocation8 + $0x18] sm:$0xff]
    %v980 = vsel %vm190, %v685, 0
    %v983 = vsel %vm190, %v863, 0
    %v986 = vsel %vm190, %v758, 0
    %v989 = vsel %vm190, %v968, 0
    %991 = vmatprep.subr.mxu0 0.0
    %992 = vmatpush1.msra.mxu0 %v975
    %993 = vmatprep.subr.mxu0 0.0
    %994 = vmatpush1.msra.mxu0 %v976
    %995 = vmatprep.subr.mxu0 0.0
    %996 = vmatpush1.msra.mxu0 %v977
    %997 = vmatprep.subr.mxu0 0.0
    %998 = vmatpush1.msra.mxu0 %v978
    %999 = vmatprep.subr.mxu0 0.0
    %1000 = vmatpush1.msra.mxu0 0.0
    %1001 = vmatprep.subr.mxu0 0.0
    %1002 = vmatpush1.msra.mxu0 0.0
    %1003 = vmatprep.subr.mxu0 0.0
    %1004 = vmatpush1.msra.mxu0 0.0
    %1005 = vmatprep.subr.mxu0 0.0
    %1006 = vmatpush1.msra.mxu0 0.0
    %1007 = vmatprep.subr.mxu0 0.0
    %1008 = vmatpush1.msra.mxu0 0.0
    %1009 = vmatprep.subr.mxu0 0.0
    %1010 = vmatpush1.msra.mxu0 0.0
    %1011 = vmatprep.subr.mxu0 0.0
    %1012 = vmatpush1.msra.mxu0 0.0
    %1013 = vmatprep.subr.mxu0 0.0
    %1014 = vmatpush1.msra.mxu0 0.0
    %1015 = vmatprep.subr.mxu0 0.0
    %1016 = vmatpush1.msra.mxu0 0.0
    %1017 = vmatprep.subr.mxu0 0.0
    %1018 = vmatpush1.msra.mxu0 0.0
    %1019 = vmatprep.subr.mxu0 0.0
    %1020 = vmatpush1.msra.mxu0 0.0
    %1021 = vmatprep.subr.mxu0 0.0
    %1022 = vmatpush1.msra.mxu0 0.0
    %1023 = vmatprep.subr.mxu0 0.0
    %1024 = vmatpush1.msra.mxu0 0.0
    %1025 = vmatprep.subr.mxu0 0.0
    %1026 = vmatpush1.msra.mxu0 0.0
    %1027 = vmatprep.subr.mxu0 0.0
    %1028 = vmatpush1.msra.mxu0 0.0
    %1029 = vmatprep.subr.mxu0 0.0
    %1030 = vmatpush1.msra.mxu0 0.0
    %1031 = vmatprep.subr.mxu0 0.0
    %1032 = vmatpush1.msra.mxu0 0.0
    %1033 = vmatprep.subr.mxu0 0.0
    %1034 = vmatpush1.msra.mxu0 0.0
    %1035 = vmatprep.subr.mxu0 0.0
    %1036 = vmatpush1.msra.mxu0 0.0
    %1037 = vmatprep.subr.mxu0 0.0
    %1038 = vmatpush1.msra.mxu0 0.0
    %1039 = vmatprep.subr.mxu0 0.0
    %1040 = vmatpush1.msra.mxu0 0.0
    %1041 = vmatprep.subr.mxu0 0.0
    %1042 = vmatpush1.msra.mxu0 0.0
    %1043 = vmatprep.subr.mxu0 0.0
    %1044 = vmatpush1.msra.mxu0 0.0
    %1045 = vmatprep.subr.mxu0 0.0
    %1046 = vmatpush1.msra.mxu0 0.0
    %1047 = vmatprep.subr.mxu0 0.0
    %1048 = vmatpush1.msra.mxu0 0.0
    %1049 = vmatprep.subr.mxu0 0.0
    %1050 = vmatpush1.msra.mxu0 0.0
    %1051 = vmatprep.subr.mxu0 0.0
    %1052 = vmatpush1.msra.mxu0 0.0
    %1053 = vmatprep.subr.mxu0 0.0
    %1054 = vmatpush1.msra.mxu0 0.0
    %1055 = vmatprep.mubr.f32.mxu0 0.0
    %1056 = vmatmul.mubr.f32.gmra.mrb[0].mxu0 %v980
    %v1057 = vpop.f32.mrb[0].mxu0
    %v1058 = vadd.f32 0.0, %v1057
    %v1059 = vpop.f32.mrb[0].mxu0
    %1060 = vmatprep.mubr.f32.mxu0 0.0
    %1061 = vmatmul.mubr.f32.gmra.mrb[0].mxu0 %v983
    %v1062 = vpop.f32.mrb[0].mxu0
    %v1063 = vadd.f32 0.0, %v1062
    %v1064 = vpop.f32.mrb[0].mxu0
    %1065 = vmatprep.mubr.f32.mxu0 0.0
    %1066 = vmatmul.mubr.f32.gmra.mrb[0].mxu0 %v986
    %v1067 = vpop.f32.mrb[0].mxu0
    %v1068 = vadd.f32 0.0, %v1067
    %v1069 = vpop.f32.mrb[0].mxu0
    %1070 = vmatprep.mubr.f32.mxu0 0.0
    %1071 = vmatmul.mubr.f32.gmra.mrb[0].mxu0 %v989
    %v1072 = vpop.f32.mrb[0].mxu0
    %v1073 = vadd.f32 0.0, %v1072
    %v1074 = vpop.f32.mrb[0].mxu0
    %1075 = vdwg.mxu0
    %1076 = vmatprep.subr.mxu0 0.0
    %1077 = vmatpush1.msra.mxu0 %v971
    %1078 = vmatprep.subr.mxu0 0.0
    %1079 = vmatpush1.msra.mxu0 %v972
    %1080 = vmatprep.subr.mxu0 0.0
    %1081 = vmatpush1.msra.mxu0 %v973
    %1082 = vmatprep.subr.mxu0 0.0
    %1083 = vmatpush1.msra.mxu0 %v974
    %1084 = vmatprep.subr.mxu0 0.0
    %1085 = vmatpush1.msra.mxu0 0.0
    %1086 = vmatprep.subr.mxu0 0.0
    %1087 = vmatpush1.msra.mxu0 0.0
    %1088 = vmatprep.subr.mxu0 0.0
    %1089 = vmatpush1.msra.mxu0 0.0
    %1090 = vmatprep.subr.mxu0 0.0
    %1091 = vmatpush1.msra.mxu0 0.0
    %1092 = vmatprep.subr.mxu0 0.0
    %1093 = vmatpush1.msra.mxu0 0.0
    %1094 = vmatprep.subr.mxu0 0.0
    %1095 = vmatpush1.msra.mxu0 0.0
    %1096 = vmatprep.subr.mxu0 0.0
    %1097 = vmatpush1.msra.mxu0 0.0
    %1098 = vmatprep.subr.mxu0 0.0
    %1099 = vmatpush1.msra.mxu0 0.0
    %1100 = vmatprep.subr.mxu0 0.0
    %1101 = vmatpush1.msra.mxu0 0.0
    %1102 = vmatprep.subr.mxu0 0.0
    %1103 = vmatpush1.msra.mxu0 0.0
    %1104 = vmatprep.subr.mxu0 0.0
    %1105 = vmatpush1.msra.mxu0 0.0
    %1106 = vmatprep.subr.mxu0 0.0
    %1107 = vmatpush1.msra.mxu0 0.0
    %1108 = vmatprep.subr.mxu0 0.0
    %1109 = vmatpush1.msra.mxu0 0.0
    %1110 = vmatprep.subr.mxu0 0.0
    %1111 = vmatpush1.msra.mxu0 0.0
    %1112 = vmatprep.subr.mxu0 0.0
    %1113 = vmatpush1.msra.mxu0 0.0
    %1114 = vmatprep.subr.mxu0 0.0
    %1115 = vmatpush1.msra.mxu0 0.0
    %1116 = vmatprep.subr.mxu0 0.0
    %1117 = vmatpush1.msra.mxu0 0.0
    %1118 = vmatprep.subr.mxu0 0.0
    %1119 = vmatpush1.msra.mxu0 0.0
    %1120 = vmatprep.subr.mxu0 0.0
    %1121 = vmatpush1.msra.mxu0 0.0
    %1122 = vmatprep.subr.mxu0 0.0
    %1123 = vmatpush1.msra.mxu0 0.0
    %1124 = vmatprep.subr.mxu0 0.0
    %1125 = vmatpush1.msra.mxu0 0.0
    %1126 = vmatprep.subr.mxu0 0.0
    %1127 = vmatpush1.msra.mxu0 0.0
    %1128 = vmatprep.subr.mxu0 0.0
    %1129 = vmatpush1.msra.mxu0 0.0
    %1130 = vmatprep.subr.mxu0 0.0
    %1131 = vmatpush1.msra.mxu0 0.0
    %1132 = vmatprep.subr.mxu0 0.0
    %1133 = vmatpush1.msra.mxu0 0.0
    %1134 = vmatprep.subr.mxu0 0.0
    %1135 = vmatpush1.msra.mxu0 0.0
    %1136 = vmatprep.subr.mxu0 0.0
    %1137 = vmatpush1.msra.mxu0 0.0
    %1138 = vmatprep.subr.mxu0 0.0
    %1139 = vmatpush1.msra.mxu0 0.0
    %1140 = vmatprep.mubr.f32.mxu0 0.0
    %1141 = vmatmul.mubr.f32.gmra.mrb[0].mxu0 %v192
    %v1142 = vpop.f32.mrb[0].mxu0
    %v1143 = vadd.f32 %v1058, %v1142
    %v1144 = vpop.f32.mrb[0].mxu0
    %1145 = vmatprep.mubr.f32.mxu0 0.0
    %1146 = vmatmul.mubr.f32.gmra.mrb[0].mxu0 %v195
    %v1147 = vpop.f32.mrb[0].mxu0
    %v1148 = vadd.f32 %v1063, %v1147
    %v1149 = vpop.f32.mrb[0].mxu0
    %1150 = vmatprep.mubr.f32.mxu0 0.0
    %1151 = vmatmul.mubr.f32.gmra.mrb[0].mxu0 %v198
    %v1152 = vpop.f32.mrb[0].mxu0
    %v1153 = vadd.f32 %v1068, %v1152
    %v1154 = vpop.f32.mrb[0].mxu0
    %1155 = vmatprep.mubr.f32.mxu0 0.0
    %1156 = vmatmul.mubr.f32.gmra.mrb[0].mxu0 %v201
    %v1157 = vpop.f32.mrb[0].mxu0
    %v1158 = vadd.f32 %v1073, %v1157
    %v1159 = vpop.f32.mrb[0].mxu0
    %1160 = vdwg.mxu0
    %v1161 = vld [vmem:[#allocation10] sm:$0x1]
    %v1163 = vlaneseq
    %v1164 = vshrl.u32 %v1163, 7
    %v1165 = vsub.s32 0, %v1164
    %v1166 = vrot.slane %v1161, %v1165
    %v1168 = vadd.f32 %v1143, %v1166
    %v1169 = vadd.f32 %v1148, %v1166
    %v1170 = vadd.f32 %v1153, %v1166
    %v1171 = vadd.f32 %v1158, %v1166
    %v1172 = vmax.f32 %v1168, 0.0
    %v1173 = vmax.f32 %v1169, 0.0
    %v1174 = vmax.f32 %v1170, 0.0
    %v1175 = vmax.f32 %v1171, 0.0
    %v1176 = vld [vmem:[%s8] sm:$0xff]
    %v1177 = vld [vmem:[%s8 + $0x8] sm:$0xff]
    %v1178 = vld [vmem:[%s8 + $0x10] sm:$0xff]
    %v1179 = vld [vmem:[%s8 + $0x18] sm:$0xff]
    %v1180 = vld [vmem:[#allocation11] sm:$0x1]
    %v1182 = vlaneseq
    %v1183 = vshrl.u32 %v1182, 7
    %v1184 = vsub.s32 0, %v1183
    %v1185 = vrot.slane %v1180, %v1184
    %v1188 = vsel %vm190, %v1172, 0
    %v1191 = vsel %vm190, %v1173, 0
    %v1194 = vsel %vm190, %v1174, 0
    %v1197 = vsel %vm190, %v1175, 0
    %1199 = vmatprep.subr.mxu0 0.0
    %1200 = vmatpush1.msra.mxu0 %v1176
    %1201 = vmatprep.subr.mxu0 0.0
    %1202 = vmatpush1.msra.mxu0 %v1177
    %1203 = vmatprep.subr.mxu0 0.0
    %1204 = vmatpush1.msra.mxu0 %v1178
    %1205 = vmatprep.subr.mxu0 0.0
    %1206 = vmatpush1.msra.mxu0 %v1179
    %1207 = vmatprep.subr.mxu0 0.0
    %1208 = vmatpush1.msra.mxu0 0.0
    %1209 = vmatprep.subr.mxu0 0.0
    %1210 = vmatpush1.msra.mxu0 0.0
    %1211 = vmatprep.subr.mxu0 0.0
    %1212 = vmatpush1.msra.mxu0 0.0
    %1213 = vmatprep.subr.mxu0 0.0
    %1214 = vmatpush1.msra.mxu0 0.0
    %1215 = vmatprep.subr.mxu0 0.0
    %1216 = vmatpush1.msra.mxu0 0.0
    %1217 = vmatprep.subr.mxu0 0.0
    %1218 = vmatpush1.msra.mxu0 0.0
    %1219 = vmatprep.subr.mxu0 0.0
    %1220 = vmatpush1.msra.mxu0 0.0
    %1221 = vmatprep.subr.mxu0 0.0
    %1222 = vmatpush1.msra.mxu0 0.0
    %1223 = vmatprep.subr.mxu0 0.0
    %1224 = vmatpush1.msra.mxu0 0.0
    %1225 = vmatprep.subr.mxu0 0.0
    %1226 = vmatpush1.msra.mxu0 0.0
    %1227 = vmatprep.subr.mxu0 0.0
    %1228 = vmatpush1.msra.mxu0 0.0
    %1229 = vmatprep.subr.mxu0 0.0
    %1230 = vmatpush1.msra.mxu0 0.0
    %1231 = vmatprep.subr.mxu0 0.0
    %1232 = vmatpush1.msra.mxu0 0.0
    %1233 = vmatprep.subr.mxu0 0.0
    %1234 = vmatpush1.msra.mxu0 0.0
    %1235 = vmatprep.subr.mxu0 0.0
    %1236 = vmatpush1.msra.mxu0 0.0
    %1237 = vmatprep.subr.mxu0 0.0
    %1238 = vmatpush1.msra.mxu0 0.0
    %1239 = vmatprep.subr.mxu0 0.0
    %1240 = vmatpush1.msra.mxu0 0.0
    %1241 = vmatprep.subr.mxu0 0.0
    %1242 = vmatpush1.msra.mxu0 0.0
    %1243 = vmatprep.subr.mxu0 0.0
    %1244 = vmatpush1.msra.mxu0 0.0
    %1245 = vmatprep.subr.mxu0 0.0
    %1246 = vmatpush1.msra.mxu0 0.0
    %1247 = vmatprep.subr.mxu0 0.0
    %1248 = vmatpush1.msra.mxu0 0.0
    %1249 = vmatprep.subr.mxu0 0.0
    %1250 = vmatpush1.msra.mxu0 0.0
    %1251 = vmatprep.subr.mxu0 0.0
    %1252 = vmatpush1.msra.mxu0 0.0
    %1253 = vmatprep.subr.mxu0 0.0
    %1254 = vmatpush1.msra.mxu0 0.0
    %1255 = vmatprep.subr.mxu0 0.0
    %1256 = vmatpush1.msra.mxu0 0.0
    %1257 = vmatprep.subr.mxu0 0.0
    %1258 = vmatpush1.msra.mxu0 0.0
    %1259 = vmatprep.subr.mxu0 0.0
    %1260 = vmatpush1.msra.mxu0 0.0
    %1261 = vmatprep.subr.mxu0 0.0
    %1262 = vmatpush1.msra.mxu0 0.0
    %1263 = vmatprep.mubr.f32.mxu0 0.0
    %1264 = vmatmul.mubr.f32.gmra.mrb[0].mxu0 %v1188
    %v1265 = vpop.f32.mrb[0].mxu0
    %v1266 = vadd.f32 %v1185, %v1265
    %v1267 = vpop.f32.mrb[0].mxu0
    %1268 = vmatprep.mubr.f32.mxu0 0.0
    %1269 = vmatmul.mubr.f32.gmra.mrb[0].mxu0 %v1191
    %v1270 = vpop.f32.mrb[0].mxu0
    %v1271 = vadd.f32 %v1185, %v1270
    %v1272 = vpop.f32.mrb[0].mxu0
    %1273 = vmatprep.mubr.f32.mxu0 0.0
    %1274 = vmatmul.mubr.f32.gmra.mrb[0].mxu0 %v1194
    %v1275 = vpop.f32.mrb[0].mxu0
    %v1276 = vadd.f32 %v1185, %v1275
    %v1277 = vpop.f32.mrb[0].mxu0
    %1278 = vmatprep.mubr.f32.mxu0 0.0
    %1279 = vmatmul.mubr.f32.gmra.mrb[0].mxu0 %v1197
    %v1280 = vpop.f32.mrb[0].mxu0
    %v1281 = vadd.f32 %v1185, %v1280
    %v1282 = vpop.f32.mrb[0].mxu0
    %1283 = vdwg.mxu0
    %v1284 = vmax.f32 %v1266, 0.0
    %v1285 = vmax.f32 %v1271, 0.0
    %v1286 = vmax.f32 %v1276, 0.0
    %v1287 = vmax.f32 %v1281, 0.0
    %v1288 = vsel %vm190, %v1284, 0.0
    %v1289 = vrot.slane %v1288, 4
    %v1290 = vadd.f32 %v1288, %v1289
    %v1291 = vrot.slane %v1290, 2
    %v1292 = vadd.f32 %v1290, %v1291
    %v1293 = vrot.slane %v1292, 1
    %v1294 = vadd.f32 %v1292, %v1293
    %v1295 = vsel %vm190, %v1286, 0.0
    %v1296 = vrot.slane %v1295, 4
    %v1297 = vadd.f32 %v1295, %v1296
    %v1298 = vrot.slane %v1297, 2
    %v1299 = vadd.f32 %v1297, %v1298
    %v1300 = vrot.slane %v1299, 1
    %v1301 = vadd.f32 %v1299, %v1300
    %v1302 = vsel %vm190, %v1285, 0.0
    %v1303 = vrot.slane %v1302, 4
    %v1304 = vadd.f32 %v1302, %v1303
    %v1305 = vrot.slane %v1304, 2
    %v1306 = vadd.f32 %v1304, %v1305
    %v1307 = vrot.slane %v1306, 1
    %v1308 = vadd.f32 %v1306, %v1307
    %v1309 = vsel %vm190, %v1287, 0.0
    %v1310 = vrot.slane %v1309, 4
    %v1311 = vadd.f32 %v1309, %v1310
    %v1312 = vrot.slane %v1311, 2
    %v1313 = vadd.f32 %v1311, %v1312
    %v1314 = vrot.slane %v1313, 1
    %v1315 = vadd.f32 %v1313, %v1314
    %v1316 = vld [vmem:[#allocation13] sm:$0xff]
    %v1317 = vld [vmem:[#allocation13 + $0x8] sm:$0xff]
    %v1318 = vld [vmem:[#allocation13 + $0x10] sm:$0xff]
    %v1319 = vld [vmem:[#allocation13 + $0x18] sm:$0xff]
    %v1320 = vld [vmem:[#allocation14] sm:$0xff]
    %v1321 = vld [vmem:[#allocation14 + $0x8] sm:$0xff]
    %v1322 = vld [vmem:[#allocation14 + $0x10] sm:$0xff]
    %v1323 = vld [vmem:[#allocation14 + $0x18] sm:$0xff]
    %vm1326 = vcmask 1041409
    %v1327 = vsel %vm1326, %v1315, %v1308
    %v1328 = vsel %vm190, %v1327, 0
    %1330 = vmatprep.subr.mxu0 0.0
    %1331 = vmatpush1.msra.mxu0 %v1320
    %1332 = vmatprep.subr.mxu0 0.0
    %1333 = vmatpush1.msra.mxu0 %v1321
    %1334 = vmatprep.subr.mxu0 0.0
    %1335 = vmatpush1.msra.mxu0 %v1322
    %1336 = vmatprep.subr.mxu0 0.0
    %1337 = vmatpush1.msra.mxu0 %v1323
    %1338 = vmatprep.subr.mxu0 0.0
    %1339 = vmatpush1.msra.mxu0 0.0
    %1340 = vmatprep.subr.mxu0 0.0
    %1341 = vmatpush1.msra.mxu0 0.0
    %1342 = vmatprep.subr.mxu0 0.0
    %1343 = vmatpush1.msra.mxu0 0.0
    %1344 = vmatprep.subr.mxu0 0.0
    %1345 = vmatpush1.msra.mxu0 0.0
    %1346 = vmatprep.subr.mxu0 0.0
    %1347 = vmatpush1.msra.mxu0 0.0
    %1348 = vmatprep.subr.mxu0 0.0
    %1349 = vmatpush1.msra.mxu0 0.0
    %1350 = vmatprep.subr.mxu0 0.0
    %1351 = vmatpush1.msra.mxu0 0.0
    %1352 = vmatprep.subr.mxu0 0.0
    %1353 = vmatpush1.msra.mxu0 0.0
    %1354 = vmatprep.subr.mxu0 0.0
    %1355 = vmatpush1.msra.mxu0 0.0
    %1356 = vmatprep.subr.mxu0 0.0
    %1357 = vmatpush1.msra.mxu0 0.0
    %1358 = vmatprep.subr.mxu0 0.0
    %1359 = vmatpush1.msra.mxu0 0.0
    %1360 = vmatprep.subr.mxu0 0.0
    %1361 = vmatpush1.msra.mxu0 0.0
    %1362 = vmatprep.subr.mxu0 0.0
    %1363 = vmatpush1.msra.mxu0 0.0
    %1364 = vmatprep.subr.mxu0 0.0
    %1365 = vmatpush1.msra.mxu0 0.0
    %1366 = vmatprep.subr.mxu0 0.0
    %1367 = vmatpush1.msra.mxu0 0.0
    %1368 = vmatprep.subr.mxu0 0.0
    %1369 = vmatpush1.msra.mxu0 0.0
    %1370 = vmatprep.subr.mxu0 0.0
    %1371 = vmatpush1.msra.mxu0 0.0
    %1372 = vmatprep.subr.mxu0 0.0
    %1373 = vmatpush1.msra.mxu0 0.0
    %1374 = vmatprep.subr.mxu0 0.0
    %1375 = vmatpush1.msra.mxu0 0.0
    %1376 = vmatprep.subr.mxu0 0.0
    %1377 = vmatpush1.msra.mxu0 0.0
    %1378 = vmatprep.subr.mxu0 0.0
    %1379 = vmatpush1.msra.mxu0 0.0
    %1380 = vmatprep.subr.mxu0 0.0
    %1381 = vmatpush1.msra.mxu0 0.0
    %1382 = vmatprep.subr.mxu0 0.0
    %1383 = vmatpush1.msra.mxu0 0.0
    %1384 = vmatprep.subr.mxu0 0.0
    %1385 = vmatpush1.msra.mxu0 0.0
    %1386 = vmatprep.subr.mxu0 0.0
    %1387 = vmatpush1.msra.mxu0 0.0
    %1388 = vmatprep.subr.mxu0 0.0
    %1389 = vmatpush1.msra.mxu0 0.0
    %1390 = vmatprep.subr.mxu0 0.0
    %1391 = vmatpush1.msra.mxu0 0.0
    %1392 = vmatprep.subr.mxu0 0.0
    %1393 = vmatpush1.msra.mxu0 0.0
    %1394 = vmatprep.mubr.f32.mxu0 0.0
    %1395 = vmatmul.mubr.f32.gmra.mrb[0].mxu0 %v1328
    %v1396 = vpop.f32.mrb[0].mxu0
    %v1397 = vadd.f32 0.0, %v1396
    %v1398 = vpop.f32.mrb[0].mxu0
    %1399 = vdwg.mxu0
    %v1402 = vsel %vm1326, %v1301, %v1294
    %v1403 = vsel %vm190, %v1402, 0
    %1405 = vmatprep.subr.mxu0 0.0
    %1406 = vmatpush1.msra.mxu0 %v1316
    %1407 = vmatprep.subr.mxu0 0.0
    %1408 = vmatpush1.msra.mxu0 %v1317
    %1409 = vmatprep.subr.mxu0 0.0
    %1410 = vmatpush1.msra.mxu0 %v1318
    %1411 = vmatprep.subr.mxu0 0.0
    %1412 = vmatpush1.msra.mxu0 %v1319
    %1413 = vmatprep.subr.mxu0 0.0
    %1414 = vmatpush1.msra.mxu0 0.0
    %1415 = vmatprep.subr.mxu0 0.0
    %1416 = vmatpush1.msra.mxu0 0.0
    %1417 = vmatprep.subr.mxu0 0.0
    %1418 = vmatpush1.msra.mxu0 0.0
    %1419 = vmatprep.subr.mxu0 0.0
    %1420 = vmatpush1.msra.mxu0 0.0
    %1421 = vmatprep.subr.mxu0 0.0
    %1422 = vmatpush1.msra.mxu0 0.0
    %1423 = vmatprep.subr.mxu0 0.0
    %1424 = vmatpush1.msra.mxu0 0.0
    %1425 = vmatprep.subr.mxu0 0.0
    %1426 = vmatpush1.msra.mxu0 0.0
    %1427 = vmatprep.subr.mxu0 0.0
    %1428 = vmatpush1.msra.mxu0 0.0
    %1429 = vmatprep.subr.mxu0 0.0
    %1430 = vmatpush1.msra.mxu0 0.0
    %1431 = vmatprep.subr.mxu0 0.0
    %1432 = vmatpush1.msra.mxu0 0.0
    %1433 = vmatprep.subr.mxu0 0.0
    %1434 = vmatpush1.msra.mxu0 0.0
    %1435 = vmatprep.subr.mxu0 0.0
    %1436 = vmatpush1.msra.mxu0 0.0
    %1437 = vmatprep.subr.mxu0 0.0
    %1438 = vmatpush1.msra.mxu0 0.0
    %1439 = vmatprep.subr.mxu0 0.0
    %1440 = vmatpush1.msra.mxu0 0.0
    %1441 = vmatprep.subr.mxu0 0.0
    %1442 = vmatpush1.msra.mxu0 0.0
    %1443 = vmatprep.subr.mxu0 0.0
    %1444 = vmatpush1.msra.mxu0 0.0
    %1445 = vmatprep.subr.mxu0 0.0
    %1446 = vmatpush1.msra.mxu0 0.0
    %1447 = vmatprep.subr.mxu0 0.0
    %1448 = vmatpush1.msra.mxu0 0.0
    %1449 = vmatprep.subr.mxu0 0.0
    %1450 = vmatpush1.msra.mxu0 0.0
    %1451 = vmatprep.subr.mxu0 0.0
    %1452 = vmatpush1.msra.mxu0 0.0
    %1453 = vmatprep.subr.mxu0 0.0
    %1454 = vmatpush1.msra.mxu0 0.0
    %1455 = vmatprep.subr.mxu0 0.0
    %1456 = vmatpush1.msra.mxu0 0.0
    %1457 = vmatprep.subr.mxu0 0.0
    %1458 = vmatpush1.msra.mxu0 0.0
    %1459 = vmatprep.subr.mxu0 0.0
    %1460 = vmatpush1.msra.mxu0 0.0
    %1461 = vmatprep.subr.mxu0 0.0
    %1462 = vmatpush1.msra.mxu0 0.0
    %1463 = vmatprep.subr.mxu0 0.0
    %1464 = vmatpush1.msra.mxu0 0.0
    %1465 = vmatprep.subr.mxu0 0.0
    %1466 = vmatpush1.msra.mxu0 0.0
    %1467 = vmatprep.subr.mxu0 0.0
    %1468 = vmatpush1.msra.mxu0 0.0
    %1469 = vmatprep.mubr.f32.mxu0 0.0
    %1470 = vmatmul.mubr.f32.gmra.mrb[0].mxu0 %v1403
    %v1471 = vpop.f32.mrb[0].mxu0
    %v1472 = vadd.f32 %v1397, %v1471
    %v1473 = vpop.f32.mrb[0].mxu0
    %1474 = vdwg.mxu0
    %v1475 = vld [vmem:[%s12] sm:$0x1]
    %v1477 = vlaneseq
    %v1478 = vshrl.u32 %v1477, 7
    %v1479 = vsub.s32 0, %v1478
    %v1480 = vrot.slane %v1475, %v1479
    %v1482 = vadd.f32 %v1472, %v1480
    %v1483 = vmax.f32 %v1482, 0.0
    %v1484 = vld [vmem:[#allocation16] sm:$0xff]
    %v1485 = vld [vmem:[#allocation16 + $0x8] sm:$0xff]
    %v1486 = vld [vmem:[#allocation16 + $0x10] sm:$0xff]
    %v1487 = vld [vmem:[#allocation16 + $0x18] sm:$0xff]
    %v1488 = vld [vmem:[%s14] sm:$0x1]
    %v1490 = vlaneseq
    %v1491 = vshrl.u32 %v1490, 7
    %v1492 = vsub.s32 0, %v1491
    %v1493 = vrot.slane %v1488, %v1492
    %v1496 = vsel %vm190, %v1483, 0
    %1498 = vmatprep.subr.mxu0 0.0
    %1499 = vmatpush1.msra.mxu0 %v1484
    %1500 = vmatprep.subr.mxu0 0.0
    %1501 = vmatpush1.msra.mxu0 %v1485
    %1502 = vmatprep.subr.mxu0 0.0
    %1503 = vmatpush1.msra.mxu0 %v1486
    %1504 = vmatprep.subr.mxu0 0.0
    %1505 = vmatpush1.msra.mxu0 %v1487
    %1506 = vmatprep.subr.mxu0 0.0
    %1507 = vmatpush1.msra.mxu0 0.0
    %1508 = vmatprep.subr.mxu0 0.0
    %1509 = vmatpush1.msra.mxu0 0.0
    %1510 = vmatprep.subr.mxu0 0.0
    %1511 = vmatpush1.msra.mxu0 0.0
    %1512 = vmatprep.subr.mxu0 0.0
    %1513 = vmatpush1.msra.mxu0 0.0
    %1514 = vmatprep.subr.mxu0 0.0
    %1515 = vmatpush1.msra.mxu0 0.0
    %1516 = vmatprep.subr.mxu0 0.0
    %1517 = vmatpush1.msra.mxu0 0.0
    %1518 = vmatprep.subr.mxu0 0.0
    %1519 = vmatpush1.msra.mxu0 0.0
    %1520 = vmatprep.subr.mxu0 0.0
    %1521 = vmatpush1.msra.mxu0 0.0
    %1522 = vmatprep.subr.mxu0 0.0
    %1523 = vmatpush1.msra.mxu0 0.0
    %1524 = vmatprep.subr.mxu0 0.0
    %1525 = vmatpush1.msra.mxu0 0.0
    %1526 = vmatprep.subr.mxu0 0.0
    %1527 = vmatpush1.msra.mxu0 0.0
    %1528 = vmatprep.subr.mxu0 0.0
    %1529 = vmatpush1.msra.mxu0 0.0
    %1530 = vmatprep.subr.mxu0 0.0
    %1531 = vmatpush1.msra.mxu0 0.0
    %1532 = vmatprep.subr.mxu0 0.0
    %1533 = vmatpush1.msra.mxu0 0.0
    %1534 = vmatprep.subr.mxu0 0.0
    %1535 = vmatpush1.msra.mxu0 0.0
    %1536 = vmatprep.subr.mxu0 0.0
    %1537 = vmatpush1.msra.mxu0 0.0
    %1538 = vmatprep.subr.mxu0 0.0
    %1539 = vmatpush1.msra.mxu0 0.0
    %1540 = vmatprep.subr.mxu0 0.0
    %1541 = vmatpush1.msra.mxu0 0.0
    %1542 = vmatprep.subr.mxu0 0.0
    %1543 = vmatpush1.msra.mxu0 0.0
    %1544 = vmatprep.subr.mxu0 0.0
    %1545 = vmatpush1.msra.mxu0 0.0
    %1546 = vmatprep.subr.mxu0 0.0
    %1547 = vmatpush1.msra.mxu0 0.0
    %1548 = vmatprep.subr.mxu0 0.0
    %1549 = vmatpush1.msra.mxu0 0.0
    %1550 = vmatprep.subr.mxu0 0.0
    %1551 = vmatpush1.msra.mxu0 0.0
    %1552 = vmatprep.subr.mxu0 0.0
    %1553 = vmatpush1.msra.mxu0 0.0
    %1554 = vmatprep.subr.mxu0 0.0
    %1555 = vmatpush1.msra.mxu0 0.0
    %1556 = vmatprep.subr.mxu0 0.0
    %1557 = vmatpush1.msra.mxu0 0.0
    %1558 = vmatprep.subr.mxu0 0.0
    %1559 = vmatpush1.msra.mxu0 0.0
    %1560 = vmatprep.subr.mxu0 0.0
    %1561 = vmatpush1.msra.mxu0 0.0
    %1562 = vmatprep.mubr.f32.mxu0 0.0
    %1563 = vmatmul.mubr.f32.gmra.mrb[0].mxu0 %v1496
    %v1564 = vpop.f32.mrb[0].mxu0
    %v1565 = vadd.f32 %v1493, %v1564
    %v1566 = vpop.f32.mrb[0].mxu0
    %1567 = vdwg.mxu0
    %v1568 = vmax.f32 %v1565, 0.0
    %v1569 = vld [vmem:[%s15] sm:$0xff]
    %v1570 = vld [vmem:[%s15 + $0x8] sm:$0xff]
    %v1571 = vld [vmem:[%s15 + $0x10] sm:$0xff]
    %v1572 = vld [vmem:[%s15 + $0x18] sm:$0xff]
    %v1573 = vld [vmem:[%s16] sm:$0x1]
    %v1575 = vlaneseq
    %v1576 = vshrl.u32 %v1575, 7
    %v1577 = vsub.s32 0, %v1576
    %v1578 = vrot.slane %v1573, %v1577
    %v1581 = vsel %vm190, %v1568, 0
    %1583 = vmatprep.subr.mxu0 0.0
    %1584 = vmatpush1.msra.mxu0 %v1569
    %1585 = vmatprep.subr.mxu0 0.0
    %1586 = vmatpush1.msra.mxu0 %v1570
    %1587 = vmatprep.subr.mxu0 0.0
    %1588 = vmatpush1.msra.mxu0 %v1571
    %1589 = vmatprep.subr.mxu0 0.0
    %1590 = vmatpush1.msra.mxu0 %v1572
    %1591 = vmatprep.subr.mxu0 0.0
    %1592 = vmatpush1.msra.mxu0 0.0
    %1593 = vmatprep.subr.mxu0 0.0
    %1594 = vmatpush1.msra.mxu0 0.0
    %1595 = vmatprep.subr.mxu0 0.0
    %1596 = vmatpush1.msra.mxu0 0.0
    %1597 = vmatprep.subr.mxu0 0.0
    %1598 = vmatpush1.msra.mxu0 0.0
    %1599 = vmatprep.subr.mxu0 0.0
    %1600 = vmatpush1.msra.mxu0 0.0
    %1601 = vmatprep.subr.mxu0 0.0
    %1602 = vmatpush1.msra.mxu0 0.0
    %1603 = vmatprep.subr.mxu0 0.0
    %1604 = vmatpush1.msra.mxu0 0.0
    %1605 = vmatprep.subr.mxu0 0.0
    %1606 = vmatpush1.msra.mxu0 0.0
    %1607 = vmatprep.subr.mxu0 0.0
    %1608 = vmatpush1.msra.mxu0 0.0
    %1609 = vmatprep.subr.mxu0 0.0
    %1610 = vmatpush1.msra.mxu0 0.0
    %1611 = vmatprep.subr.mxu0 0.0
    %1612 = vmatpush1.msra.mxu0 0.0
    %1613 = vmatprep.subr.mxu0 0.0
    %1614 = vmatpush1.msra.mxu0 0.0
    %1615 = vmatprep.subr.mxu0 0.0
    %1616 = vmatpush1.msra.mxu0 0.0
    %1617 = vmatprep.subr.mxu0 0.0
    %1618 = vmatpush1.msra.mxu0 0.0
    %1619 = vmatprep.subr.mxu0 0.0
    %1620 = vmatpush1.msra.mxu0 0.0
    %1621 = vmatprep.subr.mxu0 0.0
    %1622 = vmatpush1.msra.mxu0 0.0
    %1623 = vmatprep.subr.mxu0 0.0
    %1624 = vmatpush1.msra.mxu0 0.0
    %1625 = vmatprep.subr.mxu0 0.0
    %1626 = vmatpush1.msra.mxu0 0.0
    %1627 = vmatprep.subr.mxu0 0.0
    %1628 = vmatpush1.msra.mxu0 0.0
    %1629 = vmatprep.subr.mxu0 0.0
    %1630 = vmatpush1.msra.mxu0 0.0
    %1631 = vmatprep.subr.mxu0 0.0
    %1632 = vmatpush1.msra.mxu0 0.0
    %1633 = vmatprep.subr.mxu0 0.0
    %1634 = vmatpush1.msra.mxu0 0.0
    %1635 = vmatprep.subr.mxu0 0.0
    %1636 = vmatpush1.msra.mxu0 0.0
    %1637 = vmatprep.subr.mxu0 0.0
    %1638 = vmatpush1.msra.mxu0 0.0
    %1639 = vmatprep.subr.mxu0 0.0
    %1640 = vmatpush1.msra.mxu0 0.0
    %1641 = vmatprep.subr.mxu0 0.0
    %1642 = vmatpush1.msra.mxu0 0.0
    %1643 = vmatprep.subr.mxu0 0.0
    %1644 = vmatpush1.msra.mxu0 0.0
    %1645 = vmatprep.subr.mxu0 0.0
    %1646 = vmatpush1.msra.mxu0 0.0
    %1647 = vmatprep.mubr.f32.mxu0 0.0
    %1648 = vmatmul.mubr.f32.gmra.mrb[0].mxu0 %v1581
    %v1649 = vpop.f32.mrb[0].mxu0
    %v1650 = vadd.f32 %v1578, %v1649
    %v1651 = vpop.f32.mrb[0].mxu0
    %1652 = vdwg.mxu0
    %vm1653 = vcmask 17408
    %1654 = vst.msk [vmem:[#allocation17] sm:$0x3] %vm1653, %v1650
    // Predicated region
    $region106: #{tpu_custom_call.1} parent=1 // pred_check
      _
    $region107: #{tpu_custom_call.1} parent=1 // pred_check_branch
      %1656 = sbr.rel (0) target = $region109
    $region108: #{tpu_custom_call.1} parent=1 // pred_region
      %s1658 = ssub.s32 32, 32
      %1659 = vsyncadd [#allocation4], %s1658
      %s1661 = sshll.u32 [#allocation17], 4
      %s1662 = int_to_ptr.vmem [resolvable:$true] %s1661
      %1664 = dma.vmem_to_hbm [thread:$0]  %s1662, 32, %s17, [#allocation4]
    $region109: #{tpu_custom_call.1} parent=1 // pred_fallthru
      _
    // Predicated region
    $region110: #{tpu_custom_call.1} parent=1 // pred_check
      _
    $region111: #{tpu_custom_call.1} parent=1 // pred_check_branch
      %1666 = sbr.rel (0) target = $region113
    $region112: #{tpu_custom_call.1} parent=1 // pred_region
      %1667 = dma.done [#allocation4], 32
    $region113: #{tpu_custom_call.1} parent=1 // pred_fallthru
      _
    %1668 = vsyncpa [#allocation3], 1
    %1669 = vsyncpa [#allocation6], 1
    %1670 = vsyncpa [#allocation9], 1
    %1671 = vsyncpa [#allocation12], 1
    %1672 = vsyncpa [#allocation15], 1
    %1673 = vsyncpa [#allocation4], 1

</llo_original>
